<compile_context>
chip_gen: v7x
topology: tpu7x:2x2x1
jax: 0.10.0
libtpu: 0.0.40
codegen_flags: <defaults>
</compile_context>

<pallas_src>
import functools

import jax
import jax.numpy as jnp
from jax.experimental import pallas as pl
from jax.experimental.pallas import tpu as pltpu

LANE = 128
SUBLANE = 8
BF16_SUBLANE = 16   # bf16 (16, 128) native tile -> row tiles must be %16


def _round_up(x, m):
    return (x + m - 1) // m * m


# ----------------------------------------------------------------------------
# Parameter init / packing
# ----------------------------------------------------------------------------
def init_params(key, n_observations, n_actions):
    """Deterministic init mirroring nn.Linear's uniform(-1/sqrt(fan_in)) scheme.

    Weights are stored as (in, out) == transpose of PyTorch's (out, in) so each
    layer is a plain `x @ W + b` on the MXU (no in-kernel transpose).
    """
    dims = [n_observations, 64, 64, 32, 16, n_actions]
    params = []
    for i in range(len(dims) - 1):
        fan_in, fan_out = dims[i], dims[i + 1]
        key, kw, kb = jax.random.split(key, 3)
        bound = 1.0 / jnp.sqrt(jnp.float32(fan_in))
        w = jax.random.uniform(kw, (fan_in, fan_out), jnp.float32, -bound, bound)
        b = jax.random.uniform(kb, (1, fan_out), jnp.float32, -bound, bound)
        params.append((w, b))
    return params


def pack_params(params, n_observations):
    """Pack the 5 (W, b) pairs into one bf16 weight slab + one f32 bias slab.

    Layer i's weight is zero-padded to (row_sizes[i], 128) and the padded
    blocks are stacked along the sublane axis.  Because padded activation
    lanes are exactly zero (bias lanes are zero-padded too, relu(0)=0), the
    zero weight rows contribute nothing, so the whole MLP runs on lane-dense
    (TB, 128) activations with no in-kernel masking.
    """
    f_pad = _round_up(n_observations, SUBLANE)
    row_sizes = [f_pad] + [LANE] * (len(params) - 1)

    w_blocks, b_rows = [], []
    for (w, b), rows in zip(params, row_sizes):
        w_blocks.append(jnp.pad(w, ((0, rows - w.shape[0]), (0, LANE - w.shape[1]))))
        b_rows.append(jnp.pad(b, ((0, 0), (0, LANE - b.shape[1]))))
    w_slab = jnp.concatenate(w_blocks, axis=0).astype(jnp.bfloat16)

    b_extra = _round_up(len(params), SUBLANE) - len(params)
    b_slab = jnp.concatenate(
        b_rows + [jnp.zeros((b_extra, LANE), jnp.float32)], axis=0
    )
    n_actions = params[-1][0].shape[1]
    return w_slab, b_slab, tuple(row_sizes), n_observations, n_actions


# ----------------------------------------------------------------------------
# Kernel
# ----------------------------------------------------------------------------
def _mlp_kernel(x_ref, w_ref, b_ref, o_ref, *, row_sizes, n_obs):
    # In-kernel f32 -> bf16 cast of the streamed x tile (no wrapper HBM pass).
    h = x_ref[...].astype(jnp.bfloat16)              # (TB, n_obs)
    off = 0
    last = len(row_sizes) - 1
    for li, rows in enumerate(row_sizes):
        k = n_obs if li == 0 else rows               # layer-1 K = raw feature count
        w = w_ref[off:off + k, :]                    # static slice of resident slab
        b = b_ref[li:li + 1, :]                      # (1, 128) f32, broadcasts
        acc = jnp.dot(h, w, preferred_element_type=jnp.float32) + b
        off += rows
        if li < last:
            h = jnp.maximum(acc, 0.0).astype(jnp.bfloat16)
        else:
            # Lane-dense (TB, 128) store; wrapper slices off the first n_actions.
            o_ref[...] = acc.astype(o_ref.dtype)


# ----------------------------------------------------------------------------
# Wrapper
# ----------------------------------------------------------------------------
def _build_and_call(x_p, w_slab, b_slab, *, tb, row_sizes, n_obs,
                    single_buffer_params):
    b_pad = x_p.shape[0]
    kernel = functools.partial(_mlp_kernel, row_sizes=row_sizes, n_obs=n_obs)

    param_kwargs = {"pipeline_mode": pl.Buffered(1)} if single_buffer_params else {}

    cost = pl.CostEstimate(
        flops=2 * b_pad * (n_obs * LANE + (len(row_sizes) - 1) * LANE * LANE),
        transcendentals=0,
        bytes_accessed=(x_p.size * 4 + w_slab.size * 2 + b_slab.size * 4
                        + b_pad * LANE * 4),
    )

    return pl.pallas_call(
        kernel,
        out_shape=jax.ShapeDtypeStruct((b_pad, LANE), jnp.float32),
        grid=(b_pad // tb,),
        in_specs=[
            pl.BlockSpec((tb, n_obs), lambda i: (i, 0)),             # streamed x tiles
            pl.BlockSpec(w_slab.shape, lambda i: (0, 0), **param_kwargs),  # resident W
            pl.BlockSpec(b_slab.shape, lambda i: (0, 0), **param_kwargs),  # resident b
        ],
        out_specs=pl.BlockSpec((tb, LANE), lambda i: (i, 0)),        # lane-dense out
        compiler_params=pltpu.CompilerParams(
            dimension_semantics=("parallel",),
        ),
        cost_estimate=cost,
    )(x_p, w_slab, b_slab)


def _pick_tile(batch):
    """One grid step for small batches; two balanced steps (keeps both v7x
    TensorCores busy; at most one extra ~0.35us step on single-TC v5e/v6e)
    once the batch is large.  Capped at 1024 rows per step."""
    if batch <= 240:
        return max(BF16_SUBLANE, _round_up(batch, BF16_SUBLANE))
    half = -(-batch // 2)
    return min(_round_up(half, BF16_SUBLANE), 1024)


def agent_network_forward(x, packed, *, tb=None):
    """x: (B, n_observations) f32; packed: output of pack_params.

    Single-TC chips (v5e/v6e) that want exactly one grid step can pass
    tb=_round_up(B, 16) explicitly.
    """
    w_slab, b_slab, row_sizes, n_obs_packed, n_actions = packed
    B, n_obs = x.shape
    assert n_obs == n_obs_packed

    if tb is None:
        tb = _pick_tile(B)
    assert tb % BF16_SUBLANE == 0, "row tile must respect bf16 (16,128) packing"

    b_pad = _round_up(B, tb)
    x_p = x if b_pad == B else jnp.pad(x, ((0, b_pad - B), (0, 0)))

    kwargs = dict(tb=tb, row_sizes=row_sizes, n_obs=n_obs)
    try:
        out = _build_and_call(x_p, w_slab, b_slab,
                              single_buffer_params=True, **kwargs)
    except Exception:
        # Fallback if this JAX build rejects pl.Buffered(1) on a pallas_call
        # BlockSpec; double-buffering the ~140 KB param slabs is harmless.
        out = _build_and_call(x_p, w_slab, b_slab,
                              single_buffer_params=False, **kwargs)
    return out[:B, :n_actions]


# ----------------------------------------------------------------------------
# Reference (same bf16 operand quantization, f32 accumulation)
# ----------------------------------------------------------------------------
def reference_forward(x, params):
    h = x.astype(jnp.bfloat16)
    for i, (w, b) in enumerate(params):
        h = jnp.dot(h, w.astype(jnp.bfloat16),
                    preferred_element_type=jnp.float32) + b
        if i < len(params) - 1:
            h = jnp.maximum(h, 0.0).astype(jnp.bfloat16)
    return h


if __name__ == "__main__":
    n_observations = 8   # small feature vector, consistent with the RL agent
    n_actions = 6
    batch = 256          # auto-tiling picks 2 balanced grid steps of 128 rows

    key = jax.random.PRNGKey(0)
    key, kx = jax.random.split(key)
    x = jax.random.normal(kx, (batch, n_observations), jnp.float32)

    params = init_params(key, n_observations, n_actions)
    packed = pack_params(params, n_observations)

    out = agent_network_forward(x, packed)
    out = jax.block_until_ready(out)

    ref = reference_forward(x, params)
    assert out.shape == (batch, n_actions)
    assert jnp.allclose(out, ref, atol=1e-3, rtol=1e-3), "mismatch vs JAX reference"

    print("KERNEL_OK")
</pallas_src>

<mosaic_0001>
module attributes {stable_mosaic.version = 11 : i64} {
  func.func @_mlp_kernel(%arg0: i32, %arg1: memref<128x8xf32, #tpu.memory_space<vmem>>, %arg2: memref<520x128xbf16, #tpu.memory_space<vmem>>, %arg3: memref<8x128xf32, #tpu.memory_space<vmem>>, %arg4: memref<128x128xf32, #tpu.memory_space<vmem>>) attributes {dimension_semantics = [#tpu.dimension_semantics<parallel>], iteration_bounds = array<i64: 2>, scalar_prefetch = 0 : i64, scratch_operands = 0 : i64, tpu.core_type = #tpu.core_type<tc>, window_params = [{transform_indices = @transform_0, window_bounds = array<i64: 128, 8>}, {pipeline_mode = #tpu.pipeline_mode<synchronous>, transform_indices = @transform_1, window_bounds = array<i64: 520, 128>}, {pipeline_mode = #tpu.pipeline_mode<synchronous>, transform_indices = @transform_2, window_bounds = array<i64: 8, 128>}, {transform_indices = @transform_3, window_bounds = array<i64: 128, 128>}]} {
    %c0 = arith.constant 0 : index
    %c0_0 = arith.constant 0 : index
    %0 = vector.load %arg1[%c0, %c0_0] : memref<128x8xf32, #tpu.memory_space<vmem>>, vector<128x8xf32>
    %1 = arith.truncf %0 : vector<128x8xf32> to vector<128x8xbf16>
    %c0_1 = arith.constant 0 : index
    %c0_2 = arith.constant 0 : index
    %2 = vector.load %arg2[%c0_1, %c0_2] : memref<520x128xbf16, #tpu.memory_space<vmem>>, vector<8x128xbf16>
    %c0_3 = arith.constant 0 : index
    %c0_4 = arith.constant 0 : index
    %3 = vector.load %arg3[%c0_3, %c0_4] : memref<8x128xf32, #tpu.memory_space<vmem>>, vector<1x128xf32>
    %cst = arith.constant dense<0.000000e+00> : vector<128x128xf32>
    %4 = tpu.matmul %1, %2, %cst {dimension_numbers = #tpu.dot_dimension_numbers<[1], [0], [0], [1], [0, 0, 1, 1], [], []>} : vector<128x8xbf16>, vector<8x128xbf16>, vector<128x128xf32> -> vector<128x128xf32>
    %5 = vector.broadcast %3 : vector<1x128xf32> to vector<128x128xf32>
    %6 = arith.addf %4, %5 : vector<128x128xf32>
    %cst_5 = arith.constant 0.000000e+00 : f32
    %7 = vector.broadcast %cst_5 : f32 to vector<128x128xf32>
    %8 = arith.maximumf %6, %7 : vector<128x128xf32>
    %9 = arith.truncf %8 : vector<128x128xf32> to vector<128x128xbf16>
    %c8 = arith.constant 8 : index
    %c0_6 = arith.constant 0 : index
    %10 = vector.load %arg2[%c8, %c0_6] : memref<520x128xbf16, #tpu.memory_space<vmem>>, vector<128x128xbf16>
    %c1 = arith.constant 1 : index
    %c0_7 = arith.constant 0 : index
    %11 = vector.load %arg3[%c1, %c0_7] : memref<8x128xf32, #tpu.memory_space<vmem>>, vector<1x128xf32>
    %cst_8 = arith.constant dense<0.000000e+00> : vector<128x128xf32>
    %12 = tpu.matmul %9, %10, %cst_8 {dimension_numbers = #tpu.dot_dimension_numbers<[1], [0], [0], [1], [0, 0, 1, 1], [], []>} : vector<128x128xbf16>, vector<128x128xbf16>, vector<128x128xf32> -> vector<128x128xf32>
    %13 = vector.broadcast %11 : vector<1x128xf32> to vector<128x128xf32>
    %14 = arith.addf %12, %13 : vector<128x128xf32>
    %cst_9 = arith.constant 0.000000e+00 : f32
    %15 = vector.broadcast %cst_9 : f32 to vector<128x128xf32>
    %16 = arith.maximumf %14, %15 : vector<128x128xf32>
    %17 = arith.truncf %16 : vector<128x128xf32> to vector<128x128xbf16>
    %c136 = arith.constant 136 : index
    %c0_10 = arith.constant 0 : index
    %18 = vector.load %arg2[%c136, %c0_10] : memref<520x128xbf16, #tpu.memory_space<vmem>>, vector<128x128xbf16>
    %c2 = arith.constant 2 : index
    %c0_11 = arith.constant 0 : index
    %19 = vector.load %arg3[%c2, %c0_11] : memref<8x128xf32, #tpu.memory_space<vmem>>, vector<1x128xf32>
    %cst_12 = arith.constant dense<0.000000e+00> : vector<128x128xf32>
    %20 = tpu.matmul %17, %18, %cst_12 {dimension_numbers = #tpu.dot_dimension_numbers<[1], [0], [0], [1], [0, 0, 1, 1], [], []>} : vector<128x128xbf16>, vector<128x128xbf16>, vector<128x128xf32> -> vector<128x128xf32>
    %21 = vector.broadcast %19 : vector<1x128xf32> to vector<128x128xf32>
    %22 = arith.addf %20, %21 : vector<128x128xf32>
    %cst_13 = arith.constant 0.000000e+00 : f32
    %23 = vector.broadcast %cst_13 : f32 to vector<128x128xf32>
    %24 = arith.maximumf %22, %23 : vector<128x128xf32>
    %25 = arith.truncf %24 : vector<128x128xf32> to vector<128x128xbf16>
    %c264 = arith.constant 264 : index
    %c0_14 = arith.constant 0 : index
    %26 = vector.load %arg2[%c264, %c0_14] : memref<520x128xbf16, #tpu.memory_space<vmem>>, vector<128x128xbf16>
    %c3 = arith.constant 3 : index
    %c0_15 = arith.constant 0 : index
    %27 = vector.load %arg3[%c3, %c0_15] : memref<8x128xf32, #tpu.memory_space<vmem>>, vector<1x128xf32>
    %cst_16 = arith.constant dense<0.000000e+00> : vector<128x128xf32>
    %28 = tpu.matmul %25, %26, %cst_16 {dimension_numbers = #tpu.dot_dimension_numbers<[1], [0], [0], [1], [0, 0, 1, 1], [], []>} : vector<128x128xbf16>, vector<128x128xbf16>, vector<128x128xf32> -> vector<128x128xf32>
    %29 = vector.broadcast %27 : vector<1x128xf32> to vector<128x128xf32>
    %30 = arith.addf %28, %29 : vector<128x128xf32>
    %cst_17 = arith.constant 0.000000e+00 : f32
    %31 = vector.broadcast %cst_17 : f32 to vector<128x128xf32>
    %32 = arith.maximumf %30, %31 : vector<128x128xf32>
    %33 = arith.truncf %32 : vector<128x128xf32> to vector<128x128xbf16>
    %c392 = arith.constant 392 : index
    %c0_18 = arith.constant 0 : index
    %34 = vector.load %arg2[%c392, %c0_18] : memref<520x128xbf16, #tpu.memory_space<vmem>>, vector<128x128xbf16>
    %c4 = arith.constant 4 : index
    %c0_19 = arith.constant 0 : index
    %35 = vector.load %arg3[%c4, %c0_19] : memref<8x128xf32, #tpu.memory_space<vmem>>, vector<1x128xf32>
    %cst_20 = arith.constant dense<0.000000e+00> : vector<128x128xf32>
    %36 = tpu.matmul %33, %34, %cst_20 {dimension_numbers = #tpu.dot_dimension_numbers<[1], [0], [0], [1], [0, 0, 1, 1], [], []>} : vector<128x128xbf16>, vector<128x128xbf16>, vector<128x128xf32> -> vector<128x128xf32>
    %37 = vector.broadcast %35 : vector<1x128xf32> to vector<128x128xf32>
    %38 = arith.addf %36, %37 : vector<128x128xf32>
    %c0_21 = arith.constant 0 : index
    %c0_22 = arith.constant 0 : index
    %39 = vector.load %arg4[%c0_21, %c0_22] : memref<128x128xf32, #tpu.memory_space<vmem>>, vector<128x128xf32>
    tpu.vector_store %arg4[%c0_21, %c0_22], %38 {strides = array<i32>} : memref<128x128xf32, #tpu.memory_space<vmem>>, vector<128x128xf32>,
    return
  }
  func.func @transform_0(%arg0: i32) -> (i32, i32) {
    %c0_i32 = arith.constant 0 : i32
    %c0_i32_0 = arith.constant 0 : i32
    return %arg0, %c0_i32 : i32, i32
  }
  func.func @transform_1(%arg0: i32) -> (i32, i32) {
    %c0_i32 = arith.constant 0 : i32
    %c0_i32_0 = arith.constant 0 : i32
    %c0_i32_1 = arith.constant 0 : i32
    return %c0_i32, %c0_i32_0 : i32, i32
  }
  func.func @transform_2(%arg0: i32) -> (i32, i32) {
    %c0_i32 = arith.constant 0 : i32
    %c0_i32_0 = arith.constant 0 : i32
    %c0_i32_1 = arith.constant 0 : i32
    return %c0_i32, %c0_i32_0 : i32, i32
  }
  func.func @transform_3(%arg0: i32) -> (i32, i32) {
    %c0_i32 = arith.constant 0 : i32
    %c0_i32_0 = arith.constant 0 : i32
    return %arg0, %c0_i32 : i32, i32
  }
}

module attributes {stable_mosaic.version = 11 : i64} {
  func.func @_mlp_kernel(%arg0: i32, %arg1: memref<128x8xf32, #tpu.memory_space<vmem>>, %arg2: memref<520x128xbf16, #tpu.memory_space<vmem>>, %arg3: memref<8x128xf32, #tpu.memory_space<vmem>>, %arg4: memref<128x128xf32, #tpu.memory_space<vmem>>) attributes {dimension_semantics = [#tpu.dimension_semantics<parallel>], iteration_bounds = array<i64: 2>, scalar_prefetch = 0 : i64, scratch_operands = 0 : i64, tpu.core_type = #tpu.core_type<tc>, window_params = [{transform_indices = @transform_0, window_bounds = array<i64: 128, 8>}, {pipeline_mode = #tpu.pipeline_mode<synchronous>, transform_indices = @transform_1, window_bounds = array<i64: 520, 128>}, {pipeline_mode = #tpu.pipeline_mode<synchronous>, transform_indices = @transform_2, window_bounds = array<i64: 8, 128>}, {transform_indices = @transform_3, window_bounds = array<i64: 128, 128>}]} {
    %c0 = arith.constant 0 : index
    %c0_0 = arith.constant 0 : index
    %0 = vector.load %arg1[%c0, %c0_0] : memref<128x8xf32, #tpu.memory_space<vmem>>, vector<128x8xf32>
    %1 = arith.truncf %0 : vector<128x8xf32> to vector<128x8xbf16>
    %c0_1 = arith.constant 0 : index
    %c0_2 = arith.constant 0 : index
    %2 = vector.load %arg2[%c0_1, %c0_2] : memref<520x128xbf16, #tpu.memory_space<vmem>>, vector<8x128xbf16>
    %c0_3 = arith.constant 0 : index
    %c0_4 = arith.constant 0 : index
    %3 = vector.load %arg3[%c0_3, %c0_4] : memref<8x128xf32, #tpu.memory_space<vmem>>, vector<1x128xf32>
    %cst = arith.constant dense<0.000000e+00> : vector<128x128xf32>
    %4 = tpu.matmul %1, %2, %cst {dimension_numbers = #tpu.dot_dimension_numbers<[1], [0], [0], [1], [0, 0, 1, 1], [], []>} : vector<128x8xbf16>, vector<8x128xbf16>, vector<128x128xf32> -> vector<128x128xf32>
    %5 = vector.broadcast %3 : vector<1x128xf32> to vector<128x128xf32>
    %6 = arith.addf %4, %5 : vector<128x128xf32>
    %cst_5 = arith.constant 0.000000e+00 : f32
    %7 = vector.broadcast %cst_5 : f32 to vector<128x128xf32>
    %8 = arith.maximumf %6, %7 : vector<128x128xf32>
    %9 = arith.truncf %8 : vector<128x128xf32> to vector<128x128xbf16>
    %c8 = arith.constant 8 : index
    %c0_6 = arith.constant 0 : index
    %10 = vector.load %arg2[%c8, %c0_6] : memref<520x128xbf16, #tpu.memory_space<vmem>>, vector<128x128xbf16>
    %c1 = arith.constant 1 : index
    %c0_7 = arith.constant 0 : index
    %11 = vector.load %arg3[%c1, %c0_7] : memref<8x128xf32, #tpu.memory_space<vmem>>, vector<1x128xf32>
    %cst_8 = arith.constant dense<0.000000e+00> : vector<128x128xf32>
    %12 = tpu.matmul %9, %10, %cst_8 {dimension_numbers = #tpu.dot_dimension_numbers<[1], [0], [0], [1], [0, 0, 1, 1], [], []>} : vector<128x128xbf16>, vector<128x128xbf16>, vector<128x128xf32> -> vector<128x128xf32>
    %13 = vector.broadcast %11 : vector<1x128xf32> to vector<128x128xf32>
    %14 = arith.addf %12, %13 : vector<128x128xf32>
    %cst_9 = arith.constant 0.000000e+00 : f32
    %15 = vector.broadcast %cst_9 : f32 to vector<128x128xf32>
    %16 = arith.maximumf %14, %15 : vector<128x128xf32>
    %17 = arith.truncf %16 : vector<128x128xf32> to vector<128x128xbf16>
    %c136 = arith.constant 136 : index
    %c0_10 = arith.constant 0 : index
    %18 = vector.load %arg2[%c136, %c0_10] : memref<520x128xbf16, #tpu.memory_space<vmem>>, vector<128x128xbf16>
    %c2 = arith.constant 2 : index
    %c0_11 = arith.constant 0 : index
    %19 = vector.load %arg3[%c2, %c0_11] : memref<8x128xf32, #tpu.memory_space<vmem>>, vector<1x128xf32>
    %cst_12 = arith.constant dense<0.000000e+00> : vector<128x128xf32>
    %20 = tpu.matmul %17, %18, %cst_12 {dimension_numbers = #tpu.dot_dimension_numbers<[1], [0], [0], [1], [0, 0, 1, 1], [], []>} : vector<128x128xbf16>, vector<128x128xbf16>, vector<128x128xf32> -> vector<128x128xf32>
    %21 = vector.broadcast %19 : vector<1x128xf32> to vector<128x128xf32>
    %22 = arith.addf %20, %21 : vector<128x128xf32>
    %cst_13 = arith.constant 0.000000e+00 : f32
    %23 = vector.broadcast %cst_13 : f32 to vector<128x128xf32>
    %24 = arith.maximumf %22, %23 : vector<128x128xf32>
    %25 = arith.truncf %24 : vector<128x128xf32> to vector<128x128xbf16>
    %c264 = arith.constant 264 : index
    %c0_14 = arith.constant 0 : index
    %26 = vector.load %arg2[%c264, %c0_14] : memref<520x128xbf16, #tpu.memory_space<vmem>>, vector<128x128xbf16>
    %c3 = arith.constant 3 : index
    %c0_15 = arith.constant 0 : index
    %27 = vector.load %arg3[%c3, %c0_15] : memref<8x128xf32, #tpu.memory_space<vmem>>, vector<1x128xf32>
    %cst_16 = arith.constant dense<0.000000e+00> : vector<128x128xf32>
    %28 = tpu.matmul %25, %26, %cst_16 {dimension_numbers = #tpu.dot_dimension_numbers<[1], [0], [0], [1], [0, 0, 1, 1], [], []>} : vector<128x128xbf16>, vector<128x128xbf16>, vector<128x128xf32> -> vector<128x128xf32>
    %29 = vector.broadcast %27 : vector<1x128xf32> to vector<128x128xf32>
    %30 = arith.addf %28, %29 : vector<128x128xf32>
    %cst_17 = arith.constant 0.000000e+00 : f32
    %31 = vector.broadcast %cst_17 : f32 to vector<128x128xf32>
    %32 = arith.maximumf %30, %31 : vector<128x128xf32>
    %33 = arith.truncf %32 : vector<128x128xf32> to vector<128x128xbf16>
    %c392 = arith.constant 392 : index
    %c0_18 = arith.constant 0 : index
    %34 = vector.load %arg2[%c392, %c0_18] : memref<520x128xbf16, #tpu.memory_space<vmem>>, vector<128x128xbf16>
    %c4 = arith.constant 4 : index
    %c0_19 = arith.constant 0 : index
    %35 = vector.load %arg3[%c4, %c0_19] : memref<8x128xf32, #tpu.memory_space<vmem>>, vector<1x128xf32>
    %cst_20 = arith.constant dense<0.000000e+00> : vector<128x128xf32>
    %36 = tpu.matmul %33, %34, %cst_20 {dimension_numbers = #tpu.dot_dimension_numbers<[1], [0], [0], [1], [0, 0, 1, 1], [], []>} : vector<128x128xbf16>, vector<128x128xbf16>, vector<128x128xf32> -> vector<128x128xf32>
    %37 = vector.broadcast %35 : vector<1x128xf32> to vector<128x128xf32>
    %38 = arith.addf %36, %37 : vector<128x128xf32>
    %c0_21 = arith.constant 0 : index
    %c0_22 = arith.constant 0 : index
    %39 = vector.load %arg4[%c0_21, %c0_22] : memref<128x128xf32, #tpu.memory_space<vmem>>, vector<128x128xf32>
    tpu.vector_store %arg4[%c0_21, %c0_22], %38 {strides = array<i32>} : memref<128x128xf32, #tpu.memory_space<vmem>>, vector<128x128xf32>,
    return
  }
  func.func @transform_0(%arg0: i32) -> (i32, i32) {
    %c0_i32 = arith.constant 0 : i32
    %c0_i32_0 = arith.constant 0 : i32
    return %arg0, %c0_i32 : i32, i32
  }
  func.func @transform_1(%arg0: i32) -> (i32, i32) {
    %c0_i32 = arith.constant 0 : i32
    %c0_i32_0 = arith.constant 0 : i32
    %c0_i32_1 = arith.constant 0 : i32
    return %c0_i32, %c0_i32_0 : i32, i32
  }
  func.func @transform_2(%arg0: i32) -> (i32, i32) {
    %c0_i32 = arith.constant 0 : i32
    %c0_i32_0 = arith.constant 0 : i32
    %c0_i32_1 = arith.constant 0 : i32
    return %c0_i32, %c0_i32_0 : i32, i32
  }
  func.func @transform_3(%arg0: i32) -> (i32, i32) {
    %c0_i32 = arith.constant 0 : i32
    %c0_i32_0 = arith.constant 0 : i32
    return %arg0, %c0_i32 : i32, i32
  }
}

</mosaic_0001>

<llo_original>
// kernel: tpu_custom_call.1
$region0: #{tpu_custom_call.1}
  #allocation0 [shape = 'u32[]', space=smem, size = 0x4, offset = 0x4, fixed_abs, tag = 'smem constant byte address 0x4 - core index']
  #allocation1 [shape = 'u32[144,128]{1,0:T(1,128)}', space=vmem, size = 0x12000, scoped, tag = 'internal scratch']
  %s0 = inlined_call_operand.vmem [shape: f32[256,8], index: 0, kind: input, shape index: {}]
  %s1 = inlined_call_operand.vmem [shape: bf16[520,128], index: 1, kind: input, shape index: {}]
  %s2 = inlined_call_operand.vmem [shape: f32[8,128], index: 2, kind: input, shape index: {}]
  %s3 = inlined_call_operand.hbm [shape: f32[256,128], index: 3, kind: output, shape index: {}]
  %s4 = sld [smem:[#allocation0]]
  $region45: #{tpu_custom_call.1} parent=0
    _
  %s6 = ssub.s32 1, %s4
  %s7 = scalar_select 0, %s6, %s4
  $region1: #{tpu_custom_call.1} parent=0
    #allocation2 [shape = 'u8[131072]{0}', space=vmem, size = 0x20000, scoped, tag = 'output window, operand 0']
    #allocation3 [shape = 's32[2]{0}', space=sflag, size = 0x8, scoped, tag = 'scoped memory for tpu_custom_call.1']
    %8 = vsyncpa [#allocation3], 0
    %s9 = scalar_lea.sflag [#allocation3], 1
    %10 = vsyncpa %s9, 0
    loop: start=0, step=1, limit=4
    $region2: #{tpu_custom_call.1} parent=1 // loop_pre_header
      _
    $region3: #{tpu_custom_call.1} parent=1 // loop_header
      %s12 = sphi 0, %s16
      %p13 = scmp.ge.s32.totalorder %s12, 4
      %s22 = sphi 0, %s24
      %s25 = sphi 0, %s22
      %s26 = sphi 0, %s25
      %s42 = sphi 0, %s26
      %s46 = sphi 0, %s46
      %s48 = sphi 0, %s46
      %s49 = sphi 0, %s48
      %s63 = sphi 0, %s49
      %s67 = sphi 0, %s67
      %s69 = sphi 0, %s67
      %s70 = sphi 0, %s69
      %s84 = sphi 0, %s70
      %s90 = sphi 0, %s92
      %s93 = sphi 0, %s90
      %s94 = sphi 0, %s93
      %s110 = sphi 0, %s94
    $region4: #{tpu_custom_call.1} parent=1 // loop_header_branch
      %15 = sbr.rel (%p13) target = $region8
    $region5: #{tpu_custom_call.1} parent=1 // loop_body
      %s17 = ssub.s32 %s12, 1
      %s18 = ssub.s32 %s12, 2
      %s19 = sadd.s32 %s12, 1
      %s20 = ssub.s32 %s12, %s19
      %p21 = scmp.eq.s32.totalorder %s20, 0
      %s23 = sadd.s32 %s22, 1
      %s24 = scalar_select %p21, %s22, %s23
      %p27 = pneg %p21
      %p28 = scmp.eq.s32.totalorder %s12, 1
      %p29 = por %p27, %p28
      %p30 = scmp.ne.s32.totalorder %s22, %s25
      %p31 = scmp.eq.s32.totalorder %s12, 0
      %p32 = por %p30, %p31
      %p33 = scmp.ne.s32.totalorder %s22, %s25
      %p34 = scmp.eq.s32.totalorder %s17, 1
      %p35 = por %p33, %p34
      %p36 = scmp.ne.s32.totalorder %s25, %s26
      %p37 = scmp.eq.s32.totalorder %s17, 0
      %p38 = por %p36, %p37
      %p39 = scmp.ne.s32.totalorder %s25, %s26
      %p40 = scmp.eq.s32.totalorder %s18, 1
      %p41 = por %p39, %p40
      %p43 = scmp.ne.s32.totalorder %s26, %s42
      %p44 = scmp.eq.s32.totalorder %s18, 0
      %p45 = por %p43, %p44
      %s47 = sadd.s32 %s46, 1
      %p50 = scmp.eq.s32.totalorder %s12, 1
      %p51 = scmp.ne.s32.totalorder %s46, %s48
      %p52 = scmp.eq.s32.totalorder %s12, 0
      %p53 = por %p51, %p52
      %p54 = scmp.ne.s32.totalorder %s46, %s48
      %p55 = scmp.eq.s32.totalorder %s17, 1
      %p56 = por %p54, %p55
      %p57 = scmp.ne.s32.totalorder %s48, %s49
      %p58 = scmp.eq.s32.totalorder %s17, 0
      %p59 = por %p57, %p58
      %p60 = scmp.ne.s32.totalorder %s48, %s49
      %p61 = scmp.eq.s32.totalorder %s18, 1
      %p62 = por %p60, %p61
      %p64 = scmp.ne.s32.totalorder %s49, %s63
      %p65 = scmp.eq.s32.totalorder %s18, 0
      %p66 = por %p64, %p65
      %s68 = sadd.s32 %s67, 1
      %p71 = scmp.eq.s32.totalorder %s12, 1
      %p72 = scmp.ne.s32.totalorder %s67, %s69
      %p73 = scmp.eq.s32.totalorder %s12, 0
      %p74 = por %p72, %p73
      %p75 = scmp.ne.s32.totalorder %s67, %s69
      %p76 = scmp.eq.s32.totalorder %s17, 1
      %p77 = por %p75, %p76
      %p78 = scmp.ne.s32.totalorder %s69, %s70
      %p79 = scmp.eq.s32.totalorder %s17, 0
      %p80 = por %p78, %p79
      %p81 = scmp.ne.s32.totalorder %s69, %s70
      %p82 = scmp.eq.s32.totalorder %s18, 1
      %p83 = por %p81, %p82
      %p85 = scmp.ne.s32.totalorder %s70, %s84
      %p86 = scmp.eq.s32.totalorder %s18, 0
      %p87 = por %p85, %p86
      %s88 = ssub.s32 %s12, %s19
      %p89 = scmp.eq.s32.totalorder %s88, 0
      %s91 = sadd.s32 %s90, 1
      %s92 = scalar_select %p89, %s90, %s91
      %p95 = pneg %p89
      %p96 = scmp.eq.s32.totalorder %s12, 1
      %p97 = por %p95, %p96
      %p98 = scmp.ne.s32.totalorder %s90, %s93
      %p99 = scmp.eq.s32.totalorder %s12, 0
      %p100 = por %p98, %p99
      %p101 = scmp.ne.s32.totalorder %s90, %s93
      %p102 = scmp.eq.s32.totalorder %s17, 1
      %p103 = por %p101, %p102
      %p104 = scmp.ne.s32.totalorder %s93, %s94
      %p105 = scmp.eq.s32.totalorder %s17, 0
      %p106 = por %p104, %p105
      %p107 = scmp.ne.s32.totalorder %s93, %s94
      %p108 = scmp.eq.s32.totalorder %s18, 1
      %p109 = por %p107, %p108
      %p111 = scmp.ne.s32.totalorder %s94, %s110
      %p112 = scmp.eq.s32.totalorder %s18, 0
      %p113 = por %p111, %p112
      %p114 = scmp.le.s32.totalorder 1, %s12
      %p115 = scmp.lt.s32.totalorder %s12, 3
      %p116 = pnand %p114, %p115
      %p117 = pneg %p116
      // Predicated region
      $region9: #{tpu_custom_call.1} parent=5 // pred_check
        _
      $region10: #{tpu_custom_call.1} parent=5 // pred_check_branch
        %119 = sbr.rel (%p116) target = $region12
      $region11: #{tpu_custom_call.1} parent=5 // pred_region
        %s120 = ssub.s32 %s12, 1
        // Predicated region
        $region13: #{tpu_custom_call.1} parent=11 // pred_check
          %p121 = pneg %p59
        $region14: #{tpu_custom_call.1} parent=11 // pred_check_branch
          %123 = sbr.rel (%p121) target = $region16
        $region15: #{tpu_custom_call.1} parent=11 // pred_region
          _
        $region16: #{tpu_custom_call.1} parent=11 // pred_fallthru
          _
        // Predicated region
        $region17: #{tpu_custom_call.1} parent=11 // pred_check
          %p124 = pneg %p80
        $region18: #{tpu_custom_call.1} parent=11 // pred_check_branch
          %126 = sbr.rel (%p124) target = $region20
        $region19: #{tpu_custom_call.1} parent=11 // pred_region
          _
        $region20: #{tpu_custom_call.1} parent=11 // pred_fallthru
          _
      $region12: #{tpu_custom_call.1} parent=5 // pred_fallthru
        _
      %p127 = scmp.lt.s32.totalorder %s12, 2
      // Predicated region
      $region21: #{tpu_custom_call.1} parent=5 // pred_check
        %p128 = pneg %p127
      $region22: #{tpu_custom_call.1} parent=5 // pred_check_branch
        %130 = sbr.rel (%p128) target = $region24
      $region23: #{tpu_custom_call.1} parent=5 // pred_region
        // Predicated region
        $region25: #{tpu_custom_call.1} parent=23 // pred_check
          %p131 = pneg %p32
        $region26: #{tpu_custom_call.1} parent=23 // pred_check_branch
          %133 = sbr.rel (%p131) target = $region28
        $region27: #{tpu_custom_call.1} parent=23 // pred_region
          %s134 = smul.u32 16, %s12
          %p135 = scmp.lt.s32.totalorder %s134, 31
          %s136 = scalar_select %p135, %s134, 31
          %s137 = smul.addr %s136, 8
          %s138 = scalar_lea.vmem %s0, %s137
          %s139 = smul.u32 16, %s12
        $region28: #{tpu_custom_call.1} parent=23 // pred_fallthru
          _
      $region24: #{tpu_custom_call.1} parent=5 // pred_fallthru
        _
      %p140 = scmp.le.s32.totalorder 1, %s12
      %p141 = scmp.lt.s32.totalorder %s12, 3
      %p142 = pnand %p140, %p141
      %p143 = pneg %p142
      // Predicated region
      $region29: #{tpu_custom_call.1} parent=5 // pred_check
        _
      $region30: #{tpu_custom_call.1} parent=5 // pred_check_branch
        %145 = sbr.rel (%p142) target = $region32
      $region31: #{tpu_custom_call.1} parent=5 // pred_region
        %s146 = ssub.s32 %s12, 1
        %s147 = smul.u32 16, %s17
        %p148 = scmp.lt.s32.totalorder %s147, 31
        %s149 = scalar_select %p148, %s147, 31
        %s150 = smul.addr %s149, 8
        %s151 = scalar_lea.vmem %s0, %s150
        %p152 = pneg %p38
        %p153 = pneg %p35
        %p154 = pneg %p59
        %p155 = pneg %p56
        %p156 = pneg %p80
        %p157 = pneg %p77
        %p158 = pneg %p106
        %p159 = pneg %p103
        %s160 = sand.u32 %s93, 1
        %s161 = scalar_lea.sflag [#allocation3], %s160
        %s162 = sand.u32 %s93, 1
        %s163 = smul.addr %s162, 128
        %s164 = scalar_lea.vmem [#allocation2], %s163
        %s165 = smul.u32 16, %s17
        %p166 = scmp.lt.s32.totalorder %s165, 31
        %s167 = scalar_select %p166, %s165, 31
        %s168 = smul.addr %s167, 8
        %s169 = scalar_lea.vmem %s0, %s168
        %s170 = smul.u32 16, %s17
        %s171 = smul.u32 16, %s17
        %v173 = vld [vmem:[%s169] sm:$0xff]
        %v174 = vld [vmem:[%s169 + $0x8] sm:$0xff]
        %v175 = vld [vmem:[%s169 + $0x10] sm:$0xff]
        %v176 = vld [vmem:[%s169 + $0x18] sm:$0xff]
        %v177 = vld [vmem:[%s169 + $0x20] sm:$0xff]
        %v178 = vld [vmem:[%s169 + $0x28] sm:$0xff]
        %v179 = vld [vmem:[%s169 + $0x30] sm:$0xff]
        %v180 = vld [vmem:[%s169 + $0x38] sm:$0xff]
        %v181 = vld [vmem:[%s169 + $0x40] sm:$0xff]
        %v182 = vld [vmem:[%s169 + $0x48] sm:$0xff]
        %v183 = vld [vmem:[%s169 + $0x50] sm:$0xff]
        %v184 = vld [vmem:[%s169 + $0x58] sm:$0xff]
        %v185 = vld [vmem:[%s169 + $0x60] sm:$0xff]
        %v186 = vld [vmem:[%s169 + $0x68] sm:$0xff]
        %v187 = vld [vmem:[%s169 + $0x70] sm:$0xff]
        %v188 = vld [vmem:[%s169 + $0x78] sm:$0xff]
        %v189 = vpack.c.bf16 %v174, %v173
        %v190 = vpack.c.bf16 %v176, %v175
        %v191 = vpack.c.bf16 %v178, %v177
        %v192 = vpack.c.bf16 %v180, %v179
        %v193 = vpack.c.bf16 %v182, %v181
        %v194 = vpack.c.bf16 %v184, %v183
        %v195 = vpack.c.bf16 %v186, %v185
        %v196 = vpack.c.bf16 %v188, %v187
        %v197 = vld [vmem:[%s1] sm:$0xf]
        %v198 = vld [vmem:[%s2] sm:$0x1]
        %v199 = vlaneseq
        %v200 = vshrl.u32 %v199, 7
        %v201 = vsub.s32 0, %v200
        %v202 = vrot.slane %v198, %v201
        %vm203 = vcmask 64512
        %v205 = vsel %vm203, %v189, 0
        %v208 = vsel %vm203, %v190, 0
        %v211 = vsel %vm203, %v191, 0
        %v214 = vsel %vm203, %v192, 0
        %v217 = vsel %vm203, %v193, 0
        %v220 = vsel %vm203, %v194, 0
        %v223 = vsel %vm203, %v195, 0
        %v226 = vsel %vm203, %v196, 0
        %vm228 = vcmask 1043456
        %v230 = vsel %vm228, %v197, 0
        %232 = vmatprep.subr.bf16.mxu0 0
        %233 = vmatpush1.bf16.msra.mxu0 %v230
        %234 = vmatprep.subr.bf16.mxu0 0
        %235 = vmatpush1.bf16.msra.mxu0 0
        %236 = vmatprep.subr.bf16.mxu0 0
        %237 = vmatpush1.bf16.msra.mxu0 0
        %238 = vmatprep.subr.bf16.mxu0 0
        %239 = vmatpush1.bf16.msra.mxu0 0
        %240 = vmatprep.subr.bf16.mxu0 0
        %241 = vmatpush1.bf16.msra.mxu0 0
        %242 = vmatprep.subr.bf16.mxu0 0
        %243 = vmatpush1.bf16.msra.mxu0 0
        %244 = vmatprep.subr.bf16.mxu0 0
        %245 = vmatpush1.bf16.msra.mxu0 0
        %246 = vmatprep.subr.bf16.mxu0 0
        %247 = vmatpush1.bf16.msra.mxu0 0
        %248 = vmatprep.subr.bf16.mxu0 0
        %249 = vmatpush1.bf16.msra.mxu0 0
        %250 = vmatprep.subr.bf16.mxu0 0
        %251 = vmatpush1.bf16.msra.mxu0 0
        %252 = vmatprep.subr.bf16.mxu0 0
        %253 = vmatpush1.bf16.msra.mxu0 0
        %254 = vmatprep.subr.bf16.mxu0 0
        %255 = vmatpush1.bf16.msra.mxu0 0
        %256 = vmatprep.subr.bf16.mxu0 0
        %257 = vmatpush1.bf16.msra.mxu0 0
        %258 = vmatprep.subr.bf16.mxu0 0
        %259 = vmatpush1.bf16.msra.mxu0 0
        %260 = vmatprep.subr.bf16.mxu0 0
        %261 = vmatpush1.bf16.msra.mxu0 0
        %262 = vmatprep.subr.bf16.mxu0 0
        %263 = vmatpush1.bf16.msra.mxu0 0
        %264 = vmatprep.mubr.bf16.mxu0 0
        %265 = vmatmul.mubr.bf16.gmra.mrb[0].mxu0 %v205
        %v266 = vpop.f32.mrb[0].mxu0
        %v267 = vadd.f32 %v202, %v266
        %v268 = vpop.f32.mrb[0].mxu0
        %v269 = vpop.f32.mrb[0].mxu0
        %v270 = vadd.f32 %v202, %v269
        %v271 = vpop.f32.mrb[0].mxu0
        %272 = vmatprep.mubr.bf16.mxu0 0
        %273 = vmatmul.mubr.bf16.gmra.mrb[0].mxu0 %v208
        %v274 = vpop.f32.mrb[0].mxu0
        %v275 = vadd.f32 %v202, %v274
        %v276 = vpop.f32.mrb[0].mxu0
        %v277 = vpop.f32.mrb[0].mxu0
        %v278 = vadd.f32 %v202, %v277
        %v279 = vpop.f32.mrb[0].mxu0
        %280 = vmatprep.mubr.bf16.mxu0 0
        %281 = vmatmul.mubr.bf16.gmra.mrb[0].mxu0 %v211
        %v282 = vpop.f32.mrb[0].mxu0
        %v283 = vadd.f32 %v202, %v282
        %v284 = vpop.f32.mrb[0].mxu0
        %v285 = vpop.f32.mrb[0].mxu0
        %v286 = vadd.f32 %v202, %v285
        %v287 = vpop.f32.mrb[0].mxu0
        %288 = vmatprep.mubr.bf16.mxu0 0
        %289 = vmatmul.mubr.bf16.gmra.mrb[0].mxu0 %v214
        %v290 = vpop.f32.mrb[0].mxu0
        %v291 = vadd.f32 %v202, %v290
        %v292 = vpop.f32.mrb[0].mxu0
        %v293 = vpop.f32.mrb[0].mxu0
        %v294 = vadd.f32 %v202, %v293
        %v295 = vpop.f32.mrb[0].mxu0
        %296 = vmatprep.mubr.bf16.mxu0 0
        %297 = vmatmul.mubr.bf16.gmra.mrb[0].mxu0 %v217
        %v298 = vpop.f32.mrb[0].mxu0
        %v299 = vadd.f32 %v202, %v298
        %v300 = vpop.f32.mrb[0].mxu0
        %v301 = vpop.f32.mrb[0].mxu0
        %v302 = vadd.f32 %v202, %v301
        %v303 = vpop.f32.mrb[0].mxu0
        %304 = vmatprep.mubr.bf16.mxu0 0
        %305 = vmatmul.mubr.bf16.gmra.mrb[0].mxu0 %v220
        %v306 = vpop.f32.mrb[0].mxu0
        %v307 = vadd.f32 %v202, %v306
        %v308 = vpop.f32.mrb[0].mxu0
        %v309 = vpop.f32.mrb[0].mxu0
        %v310 = vadd.f32 %v202, %v309
        %v311 = vpop.f32.mrb[0].mxu0
        %312 = vmatprep.mubr.bf16.mxu0 0
        %313 = vmatmul.mubr.bf16.gmra.mrb[0].mxu0 %v223
        %v314 = vpop.f32.mrb[0].mxu0
        %v315 = vadd.f32 %v202, %v314
        %v316 = vpop.f32.mrb[0].mxu0
        %v317 = vpop.f32.mrb[0].mxu0
        %v318 = vadd.f32 %v202, %v317
        %v319 = vpop.f32.mrb[0].mxu0
        %320 = vmatprep.mubr.bf16.mxu0 0
        %321 = vmatmul.mubr.bf16.gmra.mrb[0].mxu0 %v226
        %v322 = vpop.f32.mrb[0].mxu0
        %v323 = vadd.f32 %v202, %v322
        %v324 = vpop.f32.mrb[0].mxu0
        %v325 = vpop.f32.mrb[0].mxu0
        %v326 = vadd.f32 %v202, %v325
        %v327 = vpop.f32.mrb[0].mxu0
        %328 = vdwg.mxu0
        %v329 = vmax.f32 %v267, 0.0
        %v330 = vmax.f32 %v270, 0.0
        %v331 = vmax.f32 %v275, 0.0
        %v332 = vmax.f32 %v278, 0.0
        %v333 = vmax.f32 %v283, 0.0
        %v334 = vmax.f32 %v286, 0.0
        %v335 = vmax.f32 %v291, 0.0
        %v336 = vmax.f32 %v294, 0.0
        %v337 = vmax.f32 %v299, 0.0
        %v338 = vmax.f32 %v302, 0.0
        %v339 = vmax.f32 %v307, 0.0
        %v340 = vmax.f32 %v310, 0.0
        %v341 = vmax.f32 %v315, 0.0
        %v342 = vmax.f32 %v318, 0.0
        %v343 = vmax.f32 %v323, 0.0
        %v344 = vmax.f32 %v326, 0.0
        %v345 = vpack.c.bf16 %v330, %v329
        %v346 = vpack.c.bf16 %v332, %v331
        %v347 = vpack.c.bf16 %v334, %v333
        %v348 = vpack.c.bf16 %v336, %v335
        %v349 = vpack.c.bf16 %v338, %v337
        %v350 = vpack.c.bf16 %v340, %v339
        %v351 = vpack.c.bf16 %v342, %v341
        %v352 = vpack.c.bf16 %v344, %v343
        %v353 = vld [vmem:[%s1 + $0x4] sm:$0xf]
        %v354 = vld [vmem:[%s1 + $0x8] sm:$0xf]
        %v355 = vld [vmem:[%s1 + $0xc] sm:$0xf]
        %v356 = vld [vmem:[%s1 + $0x10] sm:$0xf]
        %v357 = vld [vmem:[%s1 + $0x14] sm:$0xf]
        %v358 = vld [vmem:[%s1 + $0x18] sm:$0xf]
        %v359 = vld [vmem:[%s1 + $0x1c] sm:$0xf]
        %v360 = vld [vmem:[%s1 + $0x20] sm:$0xf]
        %v361 = vld [vmem:[%s1 + $0x24] sm:$0xf]
        %v362 = vld [vmem:[%s1 + $0x28] sm:$0xf]
        %v363 = vld [vmem:[%s1 + $0x2c] sm:$0xf]
        %v364 = vld [vmem:[%s1 + $0x30] sm:$0xf]
        %v365 = vld [vmem:[%s1 + $0x34] sm:$0xf]
        %v366 = vld [vmem:[%s1 + $0x38] sm:$0xf]
        %v367 = vld [vmem:[%s1 + $0x3c] sm:$0xf]
        %v368 = vld [vmem:[%s1 + $0x40] sm:$0xf]
        %v369 = vld [vmem:[%s2 + $0x1] sm:$0x1]
        %v370 = vlaneseq
        %v371 = vshrl.u32 %v370, 7
        %v372 = vsub.s32 0, %v371
        %v373 = vrot.slane %v369, %v372
        %v390 = vunpack.c.l.b16 %v353
        %v391 = vunpack.c.l.b16 %v354
        %v392 = vunpack.c.l.b16 %v355
        %v393 = vunpack.c.l.b16 %v356
        %v394 = vunpack.c.l.b16 %v357
        %v395 = vunpack.c.l.b16 %v358
        %v396 = vunpack.c.l.b16 %v359
        %v397 = vunpack.c.l.b16 %v360
        %v398 = vunpack.c.l.b16 %v361
        %v399 = vunpack.c.l.b16 %v362
        %v400 = vunpack.c.l.b16 %v363
        %v401 = vunpack.c.l.b16 %v364
        %v402 = vunpack.c.l.b16 %v365
        %v403 = vunpack.c.l.b16 %v366
        %v404 = vunpack.c.l.b16 %v367
        %v405 = vunpack.c.l.b16 %v368
        %v406 = vpack.c.b16 %v391, %v390
        %v407 = vpack.c.b16 %v393, %v392
        %v408 = vpack.c.b16 %v395, %v394
        %v409 = vpack.c.b16 %v397, %v396
        %v410 = vpack.c.b16 %v399, %v398
        %v411 = vpack.c.b16 %v401, %v400
        %v412 = vpack.c.b16 %v403, %v402
        %v413 = vpack.c.b16 %v405, %v404
        %422 = vmatprep.subr.bf16.mxu0 0
        %423 = vmatpush1.bf16.msra.mxu0 %v406
        %424 = vmatprep.subr.bf16.mxu0 0
        %425 = vmatpush1.bf16.msra.mxu0 %v407
        %426 = vmatprep.subr.bf16.mxu0 0
        %427 = vmatpush1.bf16.msra.mxu0 %v408
        %428 = vmatprep.subr.bf16.mxu0 0
        %429 = vmatpush1.bf16.msra.mxu0 %v409
        %430 = vmatprep.subr.bf16.mxu0 0
        %431 = vmatpush1.bf16.msra.mxu0 %v410
        %432 = vmatprep.subr.bf16.mxu0 0
        %433 = vmatpush1.bf16.msra.mxu0 %v411
        %434 = vmatprep.subr.bf16.mxu0 0
        %435 = vmatpush1.bf16.msra.mxu0 %v412
        %436 = vmatprep.subr.bf16.mxu0 0
        %437 = vmatpush1.bf16.msra.mxu0 %v413
        %438 = vmatprep.subr.bf16.mxu0 0
        %439 = vmatpush1.bf16.msra.mxu0 0
        %440 = vmatprep.subr.bf16.mxu0 0
        %441 = vmatpush1.bf16.msra.mxu0 0
        %442 = vmatprep.subr.bf16.mxu0 0
        %443 = vmatpush1.bf16.msra.mxu0 0
        %444 = vmatprep.subr.bf16.mxu0 0
        %445 = vmatpush1.bf16.msra.mxu0 0
        %446 = vmatprep.subr.bf16.mxu0 0
        %447 = vmatpush1.bf16.msra.mxu0 0
        %448 = vmatprep.subr.bf16.mxu0 0
        %449 = vmatpush1.bf16.msra.mxu0 0
        %450 = vmatprep.subr.bf16.mxu0 0
        %451 = vmatpush1.bf16.msra.mxu0 0
        %452 = vmatprep.subr.bf16.mxu0 0
        %453 = vmatpush1.bf16.msra.mxu0 0
        %454 = vmatprep.mubr.bf16.mxu0 0
        %455 = vmatmul.mubr.bf16.gmra.mrb[0].mxu0 %v345
        %v456 = vpop.f32.mrb[0].mxu0
        %v457 = vadd.f32 %v373, %v456
        %v458 = vpop.f32.mrb[0].mxu0
        %v459 = vpop.f32.mrb[0].mxu0
        %v460 = vadd.f32 %v373, %v459
        %v461 = vpop.f32.mrb[0].mxu0
        %462 = vmatprep.mubr.bf16.mxu0 0
        %463 = vmatmul.mubr.bf16.gmra.mrb[0].mxu0 %v346
        %v464 = vpop.f32.mrb[0].mxu0
        %v465 = vadd.f32 %v373, %v464
        %v466 = vpop.f32.mrb[0].mxu0
        %v467 = vpop.f32.mrb[0].mxu0
        %v468 = vadd.f32 %v373, %v467
        %v469 = vpop.f32.mrb[0].mxu0
        %470 = vmatprep.mubr.bf16.mxu0 0
        %471 = vmatmul.mubr.bf16.gmra.mrb[0].mxu0 %v347
        %v472 = vpop.f32.mrb[0].mxu0
        %v473 = vadd.f32 %v373, %v472
        %v474 = vpop.f32.mrb[0].mxu0
        %v475 = vpop.f32.mrb[0].mxu0
        %v476 = vadd.f32 %v373, %v475
        %v477 = vpop.f32.mrb[0].mxu0
        %478 = vmatprep.mubr.bf16.mxu0 0
        %479 = vmatmul.mubr.bf16.gmra.mrb[0].mxu0 %v348
        %v480 = vpop.f32.mrb[0].mxu0
        %v481 = vadd.f32 %v373, %v480
        %v482 = vpop.f32.mrb[0].mxu0
        %v483 = vpop.f32.mrb[0].mxu0
        %v484 = vadd.f32 %v373, %v483
        %v485 = vpop.f32.mrb[0].mxu0
        %486 = vmatprep.mubr.bf16.mxu0 0
        %487 = vmatmul.mubr.bf16.gmra.mrb[0].mxu0 %v349
        %v488 = vpop.f32.mrb[0].mxu0
        %v489 = vadd.f32 %v373, %v488
        %v490 = vpop.f32.mrb[0].mxu0
        %v491 = vpop.f32.mrb[0].mxu0
        %v492 = vadd.f32 %v373, %v491
        %v493 = vpop.f32.mrb[0].mxu0
        %494 = vmatprep.mubr.bf16.mxu0 0
        %495 = vmatmul.mubr.bf16.gmra.mrb[0].mxu0 %v350
        %v496 = vpop.f32.mrb[0].mxu0
        %v497 = vadd.f32 %v373, %v496
        %v498 = vpop.f32.mrb[0].mxu0
        %v499 = vpop.f32.mrb[0].mxu0
        %v500 = vadd.f32 %v373, %v499
        %v501 = vpop.f32.mrb[0].mxu0
        %502 = vmatprep.mubr.bf16.mxu0 0
        %503 = vmatmul.mubr.bf16.gmra.mrb[0].mxu0 %v351
        %v504 = vpop.f32.mrb[0].mxu0
        %v505 = vadd.f32 %v373, %v504
        %v506 = vpop.f32.mrb[0].mxu0
        %v507 = vpop.f32.mrb[0].mxu0
        %v508 = vadd.f32 %v373, %v507
        %v509 = vpop.f32.mrb[0].mxu0
        %510 = vmatprep.mubr.bf16.mxu0 0
        %511 = vmatmul.mubr.bf16.gmra.mrb[0].mxu0 %v352
        %v512 = vpop.f32.mrb[0].mxu0
        %v513 = vadd.f32 %v373, %v512
        %v514 = vpop.f32.mrb[0].mxu0
        %v515 = vpop.f32.mrb[0].mxu0
        %v516 = vadd.f32 %v373, %v515
        %v517 = vpop.f32.mrb[0].mxu0
        %518 = vdwg.mxu0
        %v519 = vmax.f32 %v457, 0.0
        %v520 = vmax.f32 %v460, 0.0
        %v521 = vmax.f32 %v465, 0.0
        %v522 = vmax.f32 %v468, 0.0
        %v523 = vmax.f32 %v473, 0.0
        %v524 = vmax.f32 %v476, 0.0
        %v525 = vmax.f32 %v481, 0.0
        %v526 = vmax.f32 %v484, 0.0
        %v527 = vmax.f32 %v489, 0.0
        %v528 = vmax.f32 %v492, 0.0
        %v529 = vmax.f32 %v497, 0.0
        %v530 = vmax.f32 %v500, 0.0
        %v531 = vmax.f32 %v505, 0.0
        %v532 = vmax.f32 %v508, 0.0
        %v533 = vmax.f32 %v513, 0.0
        %v534 = vmax.f32 %v516, 0.0
        %v535 = vpack.c.bf16 %v520, %v519
        %v536 = vpack.c.bf16 %v522, %v521
        %v537 = vpack.c.bf16 %v524, %v523
        %v538 = vpack.c.bf16 %v526, %v525
        %v539 = vpack.c.bf16 %v528, %v527
        %v540 = vpack.c.bf16 %v530, %v529
        %v541 = vpack.c.bf16 %v532, %v531
        %v542 = vpack.c.bf16 %v534, %v533
        %v543 = vld [vmem:[%s1 + $0x44] sm:$0xf]
        %v544 = vld [vmem:[%s1 + $0x48] sm:$0xf]
        %v545 = vld [vmem:[%s1 + $0x4c] sm:$0xf]
        %v546 = vld [vmem:[%s1 + $0x50] sm:$0xf]
        %v547 = vld [vmem:[%s1 + $0x54] sm:$0xf]
        %v548 = vld [vmem:[%s1 + $0x58] sm:$0xf]
        %v549 = vld [vmem:[%s1 + $0x5c] sm:$0xf]
        %v550 = vld [vmem:[%s1 + $0x60] sm:$0xf]
        %v551 = vld [vmem:[%s1 + $0x64] sm:$0xf]
        %v552 = vld [vmem:[%s1 + $0x68] sm:$0xf]
        %v553 = vld [vmem:[%s1 + $0x6c] sm:$0xf]
        %v554 = vld [vmem:[%s1 + $0x70] sm:$0xf]
        %v555 = vld [vmem:[%s1 + $0x74] sm:$0xf]
        %v556 = vld [vmem:[%s1 + $0x78] sm:$0xf]
        %v557 = vld [vmem:[%s1 + $0x7c] sm:$0xf]
        %v558 = vld [vmem:[%s1 + $0x80] sm:$0xf]
        %v559 = vld [vmem:[%s2 + $0x2] sm:$0x1]
        %v560 = vlaneseq
        %v561 = vshrl.u32 %v560, 7
        %v562 = vsub.s32 0, %v561
        %v563 = vrot.slane %v559, %v562
        %v580 = vunpack.c.l.b16 %v543
        %v581 = vunpack.c.l.b16 %v544
        %v582 = vunpack.c.l.b16 %v545
        %v583 = vunpack.c.l.b16 %v546
        %v584 = vunpack.c.l.b16 %v547
        %v585 = vunpack.c.l.b16 %v548
        %v586 = vunpack.c.l.b16 %v549
        %v587 = vunpack.c.l.b16 %v550
        %v588 = vunpack.c.l.b16 %v551
        %v589 = vunpack.c.l.b16 %v552
        %v590 = vunpack.c.l.b16 %v553
        %v591 = vunpack.c.l.b16 %v554
        %v592 = vunpack.c.l.b16 %v555
        %v593 = vunpack.c.l.b16 %v556
        %v594 = vunpack.c.l.b16 %v557
        %v595 = vunpack.c.l.b16 %v558
        %v596 = vpack.c.b16 %v581, %v580
        %v597 = vpack.c.b16 %v583, %v582
        %v598 = vpack.c.b16 %v585, %v584
        %v599 = vpack.c.b16 %v587, %v586
        %v600 = vpack.c.b16 %v589, %v588
        %v601 = vpack.c.b16 %v591, %v590
        %v602 = vpack.c.b16 %v593, %v592
        %v603 = vpack.c.b16 %v595, %v594
        %612 = vmatprep.subr.bf16.mxu0 0
        %613 = vmatpush1.bf16.msra.mxu0 %v596
        %614 = vmatprep.subr.bf16.mxu0 0
        %615 = vmatpush1.bf16.msra.mxu0 %v597
        %616 = vmatprep.subr.bf16.mxu0 0
        %617 = vmatpush1.bf16.msra.mxu0 %v598
        %618 = vmatprep.subr.bf16.mxu0 0
        %619 = vmatpush1.bf16.msra.mxu0 %v599
        %620 = vmatprep.subr.bf16.mxu0 0
        %621 = vmatpush1.bf16.msra.mxu0 %v600
        %622 = vmatprep.subr.bf16.mxu0 0
        %623 = vmatpush1.bf16.msra.mxu0 %v601
        %624 = vmatprep.subr.bf16.mxu0 0
        %625 = vmatpush1.bf16.msra.mxu0 %v602
        %626 = vmatprep.subr.bf16.mxu0 0
        %627 = vmatpush1.bf16.msra.mxu0 %v603
        %628 = vmatprep.subr.bf16.mxu0 0
        %629 = vmatpush1.bf16.msra.mxu0 0
        %630 = vmatprep.subr.bf16.mxu0 0
        %631 = vmatpush1.bf16.msra.mxu0 0
        %632 = vmatprep.subr.bf16.mxu0 0
        %633 = vmatpush1.bf16.msra.mxu0 0
        %634 = vmatprep.subr.bf16.mxu0 0
        %635 = vmatpush1.bf16.msra.mxu0 0
        %636 = vmatprep.subr.bf16.mxu0 0
        %637 = vmatpush1.bf16.msra.mxu0 0
        %638 = vmatprep.subr.bf16.mxu0 0
        %639 = vmatpush1.bf16.msra.mxu0 0
        %640 = vmatprep.subr.bf16.mxu0 0
        %641 = vmatpush1.bf16.msra.mxu0 0
        %642 = vmatprep.subr.bf16.mxu0 0
        %643 = vmatpush1.bf16.msra.mxu0 0
        %644 = vmatprep.mubr.bf16.mxu0 0
        %645 = vmatmul.mubr.bf16.gmra.mrb[0].mxu0 %v535
        %v646 = vpop.f32.mrb[0].mxu0
        %v647 = vadd.f32 %v563, %v646
        %v648 = vpop.f32.mrb[0].mxu0
        %v649 = vpop.f32.mrb[0].mxu0
        %v650 = vadd.f32 %v563, %v649
        %v651 = vpop.f32.mrb[0].mxu0
        %652 = vmatprep.mubr.bf16.mxu0 0
        %653 = vmatmul.mubr.bf16.gmra.mrb[0].mxu0 %v536
        %v654 = vpop.f32.mrb[0].mxu0
        %v655 = vadd.f32 %v563, %v654
        %v656 = vpop.f32.mrb[0].mxu0
        %v657 = vpop.f32.mrb[0].mxu0
        %v658 = vadd.f32 %v563, %v657
        %v659 = vpop.f32.mrb[0].mxu0
        %660 = vmatprep.mubr.bf16.mxu0 0
        %661 = vmatmul.mubr.bf16.gmra.mrb[0].mxu0 %v537
        %v662 = vpop.f32.mrb[0].mxu0
        %v663 = vadd.f32 %v563, %v662
        %v664 = vpop.f32.mrb[0].mxu0
        %v665 = vpop.f32.mrb[0].mxu0
        %v666 = vadd.f32 %v563, %v665
        %v667 = vpop.f32.mrb[0].mxu0
        %668 = vmatprep.mubr.bf16.mxu0 0
        %669 = vmatmul.mubr.bf16.gmra.mrb[0].mxu0 %v538
        %v670 = vpop.f32.mrb[0].mxu0
        %v671 = vadd.f32 %v563, %v670
        %v672 = vpop.f32.mrb[0].mxu0
        %v673 = vpop.f32.mrb[0].mxu0
        %v674 = vadd.f32 %v563, %v673
        %v675 = vpop.f32.mrb[0].mxu0
        %676 = vmatprep.mubr.bf16.mxu0 0
        %677 = vmatmul.mubr.bf16.gmra.mrb[0].mxu0 %v539
        %v678 = vpop.f32.mrb[0].mxu0
        %v679 = vadd.f32 %v563, %v678
        %v680 = vpop.f32.mrb[0].mxu0
        %v681 = vpop.f32.mrb[0].mxu0
        %v682 = vadd.f32 %v563, %v681
        %v683 = vpop.f32.mrb[0].mxu0
        %684 = vmatprep.mubr.bf16.mxu0 0
        %685 = vmatmul.mubr.bf16.gmra.mrb[0].mxu0 %v540
        %v686 = vpop.f32.mrb[0].mxu0
        %v687 = vadd.f32 %v563, %v686
        %v688 = vpop.f32.mrb[0].mxu0
        %v689 = vpop.f32.mrb[0].mxu0
        %v690 = vadd.f32 %v563, %v689
        %v691 = vpop.f32.mrb[0].mxu0
        %692 = vmatprep.mubr.bf16.mxu0 0
        %693 = vmatmul.mubr.bf16.gmra.mrb[0].mxu0 %v541
        %v694 = vpop.f32.mrb[0].mxu0
        %v695 = vadd.f32 %v563, %v694
        %v696 = vpop.f32.mrb[0].mxu0
        %v697 = vpop.f32.mrb[0].mxu0
        %v698 = vadd.f32 %v563, %v697
        %v699 = vpop.f32.mrb[0].mxu0
        %700 = vmatprep.mubr.bf16.mxu0 0
        %701 = vmatmul.mubr.bf16.gmra.mrb[0].mxu0 %v542
        %v702 = vpop.f32.mrb[0].mxu0
        %v703 = vadd.f32 %v563, %v702
        %v704 = vpop.f32.mrb[0].mxu0
        %v705 = vpop.f32.mrb[0].mxu0
        %v706 = vadd.f32 %v563, %v705
        %v707 = vpop.f32.mrb[0].mxu0
        %708 = vdwg.mxu0
        %v709 = vmax.f32 %v647, 0.0
        %v710 = vmax.f32 %v650, 0.0
        %v711 = vmax.f32 %v655, 0.0
        %v712 = vmax.f32 %v658, 0.0
        %v713 = vmax.f32 %v663, 0.0
        %v714 = vmax.f32 %v666, 0.0
        %v715 = vmax.f32 %v671, 0.0
        %v716 = vmax.f32 %v674, 0.0
        %v717 = vmax.f32 %v679, 0.0
        %v718 = vmax.f32 %v682, 0.0
        %v719 = vmax.f32 %v687, 0.0
        %v720 = vmax.f32 %v690, 0.0
        %v721 = vmax.f32 %v695, 0.0
        %v722 = vmax.f32 %v698, 0.0
        %v723 = vmax.f32 %v703, 0.0
        %v724 = vmax.f32 %v706, 0.0
        %v725 = vpack.c.bf16 %v710, %v709
        %v726 = vpack.c.bf16 %v712, %v711
        %v727 = vpack.c.bf16 %v714, %v713
        %v728 = vpack.c.bf16 %v716, %v715
        %v729 = vpack.c.bf16 %v718, %v717
        %v730 = vpack.c.bf16 %v720, %v719
        %v731 = vpack.c.bf16 %v722, %v721
        %v732 = vpack.c.bf16 %v724, %v723
        %v733 = vld [vmem:[%s1 + $0x84] sm:$0xf]
        %v734 = vld [vmem:[%s1 + $0x88] sm:$0xf]
        %v735 = vld [vmem:[%s1 + $0x8c] sm:$0xf]
        %v736 = vld [vmem:[%s1 + $0x90] sm:$0xf]
        %v737 = vld [vmem:[%s1 + $0x94] sm:$0xf]
        %v738 = vld [vmem:[%s1 + $0x98] sm:$0xf]
        %v739 = vld [vmem:[%s1 + $0x9c] sm:$0xf]
        %v740 = vld [vmem:[%s1 + $0xa0] sm:$0xf]
        %v741 = vld [vmem:[%s1 + $0xa4] sm:$0xf]
        %v742 = vld [vmem:[%s1 + $0xa8] sm:$0xf]
        %v743 = vld [vmem:[%s1 + $0xac] sm:$0xf]
        %v744 = vld [vmem:[%s1 + $0xb0] sm:$0xf]
        %v745 = vld [vmem:[%s1 + $0xb4] sm:$0xf]
        %v746 = vld [vmem:[%s1 + $0xb8] sm:$0xf]
        %v747 = vld [vmem:[%s1 + $0xbc] sm:$0xf]
        %v748 = vld [vmem:[%s1 + $0xc0] sm:$0xf]
        %v749 = vld [vmem:[%s2 + $0x3] sm:$0x1]
        %v750 = vlaneseq
        %v751 = vshrl.u32 %v750, 7
        %v752 = vsub.s32 0, %v751
        %v753 = vrot.slane %v749, %v752
        %v770 = vunpack.c.l.b16 %v733
        %v771 = vunpack.c.l.b16 %v734
        %v772 = vunpack.c.l.b16 %v735
        %v773 = vunpack.c.l.b16 %v736
        %v774 = vunpack.c.l.b16 %v737
        %v775 = vunpack.c.l.b16 %v738
        %v776 = vunpack.c.l.b16 %v739
        %v777 = vunpack.c.l.b16 %v740
        %v778 = vunpack.c.l.b16 %v741
        %v779 = vunpack.c.l.b16 %v742
        %v780 = vunpack.c.l.b16 %v743
        %v781 = vunpack.c.l.b16 %v744
        %v782 = vunpack.c.l.b16 %v745
        %v783 = vunpack.c.l.b16 %v746
        %v784 = vunpack.c.l.b16 %v747
        %v785 = vunpack.c.l.b16 %v748
        %v786 = vpack.c.b16 %v771, %v770
        %v787 = vpack.c.b16 %v773, %v772
        %v788 = vpack.c.b16 %v775, %v774
        %v789 = vpack.c.b16 %v777, %v776
        %v790 = vpack.c.b16 %v779, %v778
        %v791 = vpack.c.b16 %v781, %v780
        %v792 = vpack.c.b16 %v783, %v782
        %v793 = vpack.c.b16 %v785, %v784
        %802 = vmatprep.subr.bf16.mxu0 0
        %803 = vmatpush1.bf16.msra.mxu0 %v786
        %804 = vmatprep.subr.bf16.mxu0 0
        %805 = vmatpush1.bf16.msra.mxu0 %v787
        %806 = vmatprep.subr.bf16.mxu0 0
        %807 = vmatpush1.bf16.msra.mxu0 %v788
        %808 = vmatprep.subr.bf16.mxu0 0
        %809 = vmatpush1.bf16.msra.mxu0 %v789
        %810 = vmatprep.subr.bf16.mxu0 0
        %811 = vmatpush1.bf16.msra.mxu0 %v790
        %812 = vmatprep.subr.bf16.mxu0 0
        %813 = vmatpush1.bf16.msra.mxu0 %v791
        %814 = vmatprep.subr.bf16.mxu0 0
        %815 = vmatpush1.bf16.msra.mxu0 %v792
        %816 = vmatprep.subr.bf16.mxu0 0
        %817 = vmatpush1.bf16.msra.mxu0 %v793
        %818 = vmatprep.subr.bf16.mxu0 0
        %819 = vmatpush1.bf16.msra.mxu0 0
        %820 = vmatprep.subr.bf16.mxu0 0
        %821 = vmatpush1.bf16.msra.mxu0 0
        %822 = vmatprep.subr.bf16.mxu0 0
        %823 = vmatpush1.bf16.msra.mxu0 0
        %824 = vmatprep.subr.bf16.mxu0 0
        %825 = vmatpush1.bf16.msra.mxu0 0
        %826 = vmatprep.subr.bf16.mxu0 0
        %827 = vmatpush1.bf16.msra.mxu0 0
        %828 = vmatprep.subr.bf16.mxu0 0
        %829 = vmatpush1.bf16.msra.mxu0 0
        %830 = vmatprep.subr.bf16.mxu0 0
        %831 = vmatpush1.bf16.msra.mxu0 0
        %832 = vmatprep.subr.bf16.mxu0 0
        %833 = vmatpush1.bf16.msra.mxu0 0
        %834 = vmatprep.mubr.bf16.mxu0 0
        %835 = vmatmul.mubr.bf16.gmra.mrb[0].mxu0 %v725
        %v836 = vpop.f32.mrb[0].mxu0
        %v837 = vadd.f32 %v753, %v836
        %v838 = vpop.f32.mrb[0].mxu0
        %v839 = vpop.f32.mrb[0].mxu0
        %v840 = vadd.f32 %v753, %v839
        %v841 = vpop.f32.mrb[0].mxu0
        %842 = vmatprep.mubr.bf16.mxu0 0
        %843 = vmatmul.mubr.bf16.gmra.mrb[0].mxu0 %v726
        %v844 = vpop.f32.mrb[0].mxu0
        %v845 = vadd.f32 %v753, %v844
        %v846 = vpop.f32.mrb[0].mxu0
        %v847 = vpop.f32.mrb[0].mxu0
        %v848 = vadd.f32 %v753, %v847
        %v849 = vpop.f32.mrb[0].mxu0
        %850 = vmatprep.mubr.bf16.mxu0 0
        %851 = vmatmul.mubr.bf16.gmra.mrb[0].mxu0 %v727
        %v852 = vpop.f32.mrb[0].mxu0
        %v853 = vadd.f32 %v753, %v852
        %v854 = vpop.f32.mrb[0].mxu0
        %v855 = vpop.f32.mrb[0].mxu0
        %v856 = vadd.f32 %v753, %v855
        %v857 = vpop.f32.mrb[0].mxu0
        %858 = vmatprep.mubr.bf16.mxu0 0
        %859 = vmatmul.mubr.bf16.gmra.mrb[0].mxu0 %v728
        %v860 = vpop.f32.mrb[0].mxu0
        %v861 = vadd.f32 %v753, %v860
        %v862 = vpop.f32.mrb[0].mxu0
        %v863 = vpop.f32.mrb[0].mxu0
        %v864 = vadd.f32 %v753, %v863
        %v865 = vpop.f32.mrb[0].mxu0
        %866 = vmatprep.mubr.bf16.mxu0 0
        %867 = vmatmul.mubr.bf16.gmra.mrb[0].mxu0 %v729
        %v868 = vpop.f32.mrb[0].mxu0
        %v869 = vadd.f32 %v753, %v868
        %v870 = vpop.f32.mrb[0].mxu0
        %v871 = vpop.f32.mrb[0].mxu0
        %v872 = vadd.f32 %v753, %v871
        %v873 = vpop.f32.mrb[0].mxu0
        %874 = vmatprep.mubr.bf16.mxu0 0
        %875 = vmatmul.mubr.bf16.gmra.mrb[0].mxu0 %v730
        %v876 = vpop.f32.mrb[0].mxu0
        %v877 = vadd.f32 %v753, %v876
        %v878 = vpop.f32.mrb[0].mxu0
        %v879 = vpop.f32.mrb[0].mxu0
        %v880 = vadd.f32 %v753, %v879
        %v881 = vpop.f32.mrb[0].mxu0
        %882 = vmatprep.mubr.bf16.mxu0 0
        %883 = vmatmul.mubr.bf16.gmra.mrb[0].mxu0 %v731
        %v884 = vpop.f32.mrb[0].mxu0
        %v885 = vadd.f32 %v753, %v884
        %v886 = vpop.f32.mrb[0].mxu0
        %v887 = vpop.f32.mrb[0].mxu0
        %v888 = vadd.f32 %v753, %v887
        %v889 = vpop.f32.mrb[0].mxu0
        %890 = vmatprep.mubr.bf16.mxu0 0
        %891 = vmatmul.mubr.bf16.gmra.mrb[0].mxu0 %v732
        %v892 = vpop.f32.mrb[0].mxu0
        %v893 = vadd.f32 %v753, %v892
        %v894 = vpop.f32.mrb[0].mxu0
        %v895 = vpop.f32.mrb[0].mxu0
        %v896 = vadd.f32 %v753, %v895
        %v897 = vpop.f32.mrb[0].mxu0
        %898 = vdwg.mxu0
        %v899 = vmax.f32 %v837, 0.0
        %v900 = vmax.f32 %v840, 0.0
        %v901 = vmax.f32 %v845, 0.0
        %v902 = vmax.f32 %v848, 0.0
        %v903 = vmax.f32 %v853, 0.0
        %v904 = vmax.f32 %v856, 0.0
        %v905 = vmax.f32 %v861, 0.0
        %v906 = vmax.f32 %v864, 0.0
        %v907 = vmax.f32 %v869, 0.0
        %v908 = vmax.f32 %v872, 0.0
        %v909 = vmax.f32 %v877, 0.0
        %v910 = vmax.f32 %v880, 0.0
        %v911 = vmax.f32 %v885, 0.0
        %v912 = vmax.f32 %v888, 0.0
        %v913 = vmax.f32 %v893, 0.0
        %v914 = vmax.f32 %v896, 0.0
        %v915 = vpack.c.bf16 %v900, %v899
        %v916 = vpack.c.bf16 %v902, %v901
        %v917 = vpack.c.bf16 %v904, %v903
        %v918 = vpack.c.bf16 %v906, %v905
        %v919 = vpack.c.bf16 %v908, %v907
        %v920 = vpack.c.bf16 %v910, %v909
        %v921 = vpack.c.bf16 %v912, %v911
        %v922 = vpack.c.bf16 %v914, %v913
        %v923 = vld [vmem:[%s1 + $0xc4] sm:$0xf]
        %v924 = vld [vmem:[%s1 + $0xc8] sm:$0xf]
        %v925 = vld [vmem:[%s1 + $0xcc] sm:$0xf]
        %v926 = vld [vmem:[%s1 + $0xd0] sm:$0xf]
        %v927 = vld [vmem:[%s1 + $0xd4] sm:$0xf]
        %v928 = vld [vmem:[%s1 + $0xd8] sm:$0xf]
        %v929 = vld [vmem:[%s1 + $0xdc] sm:$0xf]
        %v930 = vld [vmem:[%s1 + $0xe0] sm:$0xf]
        %v931 = vld [vmem:[%s1 + $0xe4] sm:$0xf]
        %v932 = vld [vmem:[%s1 + $0xe8] sm:$0xf]
        %v933 = vld [vmem:[%s1 + $0xec] sm:$0xf]
        %v934 = vld [vmem:[%s1 + $0xf0] sm:$0xf]
        %v935 = vld [vmem:[%s1 + $0xf4] sm:$0xf]
        %v936 = vld [vmem:[%s1 + $0xf8] sm:$0xf]
        %v937 = vld [vmem:[%s1 + $0xfc] sm:$0xf]
        %v938 = vld [vmem:[%s1 + $0x100] sm:$0xf]
        %v939 = vld [vmem:[%s2 + $0x4] sm:$0x1]
        %v940 = vlaneseq
        %v941 = vshrl.u32 %v940, 7
        %v942 = vsub.s32 0, %v941
        %v943 = vrot.slane %v939, %v942
        %v960 = vunpack.c.l.b16 %v923
        %v961 = vunpack.c.l.b16 %v924
        %v962 = vunpack.c.l.b16 %v925
        %v963 = vunpack.c.l.b16 %v926
        %v964 = vunpack.c.l.b16 %v927
        %v965 = vunpack.c.l.b16 %v928
        %v966 = vunpack.c.l.b16 %v929
        %v967 = vunpack.c.l.b16 %v930
        %v968 = vunpack.c.l.b16 %v931
        %v969 = vunpack.c.l.b16 %v932
        %v970 = vunpack.c.l.b16 %v933
        %v971 = vunpack.c.l.b16 %v934
        %v972 = vunpack.c.l.b16 %v935
        %v973 = vunpack.c.l.b16 %v936
        %v974 = vunpack.c.l.b16 %v937
        %v975 = vunpack.c.l.b16 %v938
        %v976 = vpack.c.b16 %v961, %v960
        %v977 = vpack.c.b16 %v963, %v962
        %v978 = vpack.c.b16 %v965, %v964
        %v979 = vpack.c.b16 %v967, %v966
        %v980 = vpack.c.b16 %v969, %v968
        %v981 = vpack.c.b16 %v971, %v970
        %v982 = vpack.c.b16 %v973, %v972
        %v983 = vpack.c.b16 %v975, %v974
        %992 = vmatprep.subr.bf16.mxu0 0
        %993 = vmatpush1.bf16.msra.mxu0 %v976
        %994 = vmatprep.subr.bf16.mxu0 0
        %995 = vmatpush1.bf16.msra.mxu0 %v977
        %996 = vmatprep.subr.bf16.mxu0 0
        %997 = vmatpush1.bf16.msra.mxu0 %v978
        %998 = vmatprep.subr.bf16.mxu0 0
        %999 = vmatpush1.bf16.msra.mxu0 %v979
        %1000 = vmatprep.subr.bf16.mxu0 0
        %1001 = vmatpush1.bf16.msra.mxu0 %v980
        %1002 = vmatprep.subr.bf16.mxu0 0
        %1003 = vmatpush1.bf16.msra.mxu0 %v981
        %1004 = vmatprep.subr.bf16.mxu0 0
        %1005 = vmatpush1.bf16.msra.mxu0 %v982
        %1006 = vmatprep.subr.bf16.mxu0 0
        %1007 = vmatpush1.bf16.msra.mxu0 %v983
        %1008 = vmatprep.subr.bf16.mxu0 0
        %1009 = vmatpush1.bf16.msra.mxu0 0
        %1010 = vmatprep.subr.bf16.mxu0 0
        %1011 = vmatpush1.bf16.msra.mxu0 0
        %1012 = vmatprep.subr.bf16.mxu0 0
        %1013 = vmatpush1.bf16.msra.mxu0 0
        %1014 = vmatprep.subr.bf16.mxu0 0
        %1015 = vmatpush1.bf16.msra.mxu0 0
        %1016 = vmatprep.subr.bf16.mxu0 0
        %1017 = vmatpush1.bf16.msra.mxu0 0
        %1018 = vmatprep.subr.bf16.mxu0 0
        %1019 = vmatpush1.bf16.msra.mxu0 0
        %1020 = vmatprep.subr.bf16.mxu0 0
        %1021 = vmatpush1.bf16.msra.mxu0 0
        %1022 = vmatprep.subr.bf16.mxu0 0
        %1023 = vmatpush1.bf16.msra.mxu0 0
        %1024 = vmatprep.mubr.bf16.mxu0 0
        %1025 = vmatmul.mubr.bf16.gmra.mrb[0].mxu0 %v915
        %v1026 = vpop.f32.mrb[0].mxu0
        %v1027 = vadd.f32 %v943, %v1026
        %v1028 = vpop.f32.mrb[0].mxu0
        %v1029 = vpop.f32.mrb[0].mxu0
        %v1030 = vadd.f32 %v943, %v1029
        %v1031 = vpop.f32.mrb[0].mxu0
        %1032 = vmatprep.mubr.bf16.mxu0 0
        %1033 = vmatmul.mubr.bf16.gmra.mrb[0].mxu0 %v916
        %v1034 = vpop.f32.mrb[0].mxu0
        %v1035 = vadd.f32 %v943, %v1034
        %v1036 = vpop.f32.mrb[0].mxu0
        %v1037 = vpop.f32.mrb[0].mxu0
        %v1038 = vadd.f32 %v943, %v1037
        %v1039 = vpop.f32.mrb[0].mxu0
        %1040 = vmatprep.mubr.bf16.mxu0 0
        %1041 = vmatmul.mubr.bf16.gmra.mrb[0].mxu0 %v917
        %v1042 = vpop.f32.mrb[0].mxu0
        %v1043 = vadd.f32 %v943, %v1042
        %v1044 = vpop.f32.mrb[0].mxu0
        %v1045 = vpop.f32.mrb[0].mxu0
        %v1046 = vadd.f32 %v943, %v1045
        %v1047 = vpop.f32.mrb[0].mxu0
        %1048 = vmatprep.mubr.bf16.mxu0 0
        %1049 = vmatmul.mubr.bf16.gmra.mrb[0].mxu0 %v918
        %v1050 = vpop.f32.mrb[0].mxu0
        %v1051 = vadd.f32 %v943, %v1050
        %v1052 = vpop.f32.mrb[0].mxu0
        %v1053 = vpop.f32.mrb[0].mxu0
        %v1054 = vadd.f32 %v943, %v1053
        %v1055 = vpop.f32.mrb[0].mxu0
        %1056 = vmatprep.mubr.bf16.mxu0 0
        %1057 = vmatmul.mubr.bf16.gmra.mrb[0].mxu0 %v919
        %v1058 = vpop.f32.mrb[0].mxu0
        %v1059 = vadd.f32 %v943, %v1058
        %v1060 = vpop.f32.mrb[0].mxu0
        %v1061 = vpop.f32.mrb[0].mxu0
        %v1062 = vadd.f32 %v943, %v1061
        %v1063 = vpop.f32.mrb[0].mxu0
        %1064 = vmatprep.mubr.bf16.mxu0 0
        %1065 = vmatmul.mubr.bf16.gmra.mrb[0].mxu0 %v920
        %v1066 = vpop.f32.mrb[0].mxu0
        %v1067 = vadd.f32 %v943, %v1066
        %v1068 = vpop.f32.mrb[0].mxu0
        %v1069 = vpop.f32.mrb[0].mxu0
        %v1070 = vadd.f32 %v943, %v1069
        %v1071 = vpop.f32.mrb[0].mxu0
        %1072 = vmatprep.mubr.bf16.mxu0 0
        %1073 = vmatmul.mubr.bf16.gmra.mrb[0].mxu0 %v921
        %v1074 = vpop.f32.mrb[0].mxu0
        %v1075 = vadd.f32 %v943, %v1074
        %v1076 = vpop.f32.mrb[0].mxu0
        %v1077 = vpop.f32.mrb[0].mxu0
        %v1078 = vadd.f32 %v943, %v1077
        %v1079 = vpop.f32.mrb[0].mxu0
        %1080 = vmatprep.mubr.bf16.mxu0 0
        %1081 = vmatmul.mubr.bf16.gmra.mrb[0].mxu0 %v922
        %v1082 = vpop.f32.mrb[0].mxu0
        %v1083 = vadd.f32 %v943, %v1082
        %v1084 = vpop.f32.mrb[0].mxu0
        %v1085 = vpop.f32.mrb[0].mxu0
        %v1086 = vadd.f32 %v943, %v1085
        %v1087 = vpop.f32.mrb[0].mxu0
        %1088 = vdwg.mxu0
        %1089 = vst [vmem:[%s164] sm:$0xff] %v1027
        %1090 = vst [vmem:[%s164 + $0x8] sm:$0xff] %v1030
        %1091 = vst [vmem:[%s164 + $0x10] sm:$0xff] %v1035
        %1092 = vst [vmem:[%s164 + $0x18] sm:$0xff] %v1038
        %1093 = vst [vmem:[%s164 + $0x20] sm:$0xff] %v1043
        %1094 = vst [vmem:[%s164 + $0x28] sm:$0xff] %v1046
        %1095 = vst [vmem:[%s164 + $0x30] sm:$0xff] %v1051
        %1096 = vst [vmem:[%s164 + $0x38] sm:$0xff] %v1054
        %1097 = vst [vmem:[%s164 + $0x40] sm:$0xff] %v1059
        %1098 = vst [vmem:[%s164 + $0x48] sm:$0xff] %v1062
        %1099 = vst [vmem:[%s164 + $0x50] sm:$0xff] %v1067
        %1100 = vst [vmem:[%s164 + $0x58] sm:$0xff] %v1070
        %1101 = vst [vmem:[%s164 + $0x60] sm:$0xff] %v1075
        %1102 = vst [vmem:[%s164 + $0x68] sm:$0xff] %v1078
        %1103 = vst [vmem:[%s164 + $0x70] sm:$0xff] %v1083
        %1104 = vst [vmem:[%s164 + $0x78] sm:$0xff] %v1086
        %s1105 = sand.u32 %s93, 1
        %s1106 = scalar_lea.sflag [#allocation3], %s1105
        %s1107 = sand.u32 %s93, 1
        %s1108 = smul.addr %s1107, 128
        %s1109 = scalar_lea.vmem [#allocation2], %s1108
        // Predicated region
        $region33: #{tpu_custom_call.1} parent=31 // pred_check
          %p1110 = pneg %p103
        $region34: #{tpu_custom_call.1} parent=31 // pred_check_branch
          %1112 = sbr.rel (%p1110) target = $region36
        $region35: #{tpu_custom_call.1} parent=31 // pred_region
          %s1113 = smul.u32 16, %s17
          %s1115 = ssub.s32 2048, 2048
          %1116 = vsyncadd %s1106, %s1115
          %s1117 = smul.addr %s1113, 128
          %s1118 = scalar_lea.hbm %s3, %s1117
          %s1119 = sshll.u32 %s1109, 4
          %s1120 = int_to_ptr.vmem [resolvable:$true] %s1119
          %1125 = dma.vmem_to_hbm [thread:$0]  %s1120, 2048, %s1118, %s1106, 128, 128, 8
        $region36: #{tpu_custom_call.1} parent=31 // pred_fallthru
          _
      $region32: #{tpu_custom_call.1} parent=5 // pred_fallthru
        _
      %p1126 = scmp.le.s32.totalorder 2, %s12
      // Predicated region
      $region37: #{tpu_custom_call.1} parent=5 // pred_check
        %p1127 = pneg %p1126
      $region38: #{tpu_custom_call.1} parent=5 // pred_check_branch
        %1129 = sbr.rel (%p1127) target = $region40
      $region39: #{tpu_custom_call.1} parent=5 // pred_region
        %s1130 = ssub.s32 %s12, 2
        // Predicated region
        $region41: #{tpu_custom_call.1} parent=39 // pred_check
          %p1131 = pneg %p109
        $region42: #{tpu_custom_call.1} parent=39 // pred_check_branch
          %1133 = sbr.rel (%p1131) target = $region44
        $region43: #{tpu_custom_call.1} parent=39 // pred_region
          %s1134 = sand.u32 %s94, 1
          %s1135 = scalar_lea.sflag [#allocation3], %s1134
          %s1136 = sand.u32 %s94, 1
          %s1137 = smul.addr %s1136, 128
          %s1138 = scalar_lea.vmem [#allocation2], %s1137
          %1139 = dma.done %s1135, 2048
        $region44: #{tpu_custom_call.1} parent=39 // pred_fallthru
          _
      $region40: #{tpu_custom_call.1} parent=5 // pred_fallthru
        _
    $region6: #{tpu_custom_call.1} parent=1 // loop_footer
      %s16 = sadd.s32 1, %s12
    $region7: #{tpu_custom_call.1} parent=1 // loop_footer_branch
      %11 = sbr.rel target = $region3
    $region8: #{tpu_custom_call.1} parent=1 // loop_exit
      _
    %1140 = vsyncpa [#allocation3], 1
    %s1141 = scalar_lea.sflag [#allocation3], 1
    %1142 = vsyncpa %s1141, 1

// kernel: tpu_custom_call.1
$region0: #{tpu_custom_call.1}
  #allocation0 [shape = 'u32[]', space=smem, size = 0x4, offset = 0x4, fixed_abs, tag = 'smem constant byte address 0x4 - core index']
  #allocation1 [shape = 'u32[144,128]{1,0:T(1,128)}', space=vmem, size = 0x12000, scoped, tag = 'internal scratch']
  %s0 = inlined_call_operand.vmem [shape: f32[256,8], index: 0, kind: input, shape index: {}]
  %s1 = inlined_call_operand.vmem [shape: bf16[520,128], index: 1, kind: input, shape index: {}]
  %s2 = inlined_call_operand.vmem [shape: f32[8,128], index: 2, kind: input, shape index: {}]
  %s3 = inlined_call_operand.hbm [shape: f32[256,128], index: 3, kind: output, shape index: {}]
  %s4 = sld [smem:[#allocation0]]
  $region45: #{tpu_custom_call.1} parent=0
    _
  %s6 = ssub.s32 1, %s4
  %s7 = scalar_select 0, %s6, %s4
  $region1: #{tpu_custom_call.1} parent=0
    #allocation2 [shape = 'u8[131072]{0}', space=vmem, size = 0x20000, scoped, tag = 'output window, operand 0']
    #allocation3 [shape = 's32[2]{0}', space=sflag, size = 0x8, scoped, tag = 'scoped memory for tpu_custom_call.1']
    %8 = vsyncpa [#allocation3], 0
    %s9 = scalar_lea.sflag [#allocation3], 1
    %10 = vsyncpa %s9, 0
    loop: start=0, step=1, limit=4
    $region2: #{tpu_custom_call.1} parent=1 // loop_pre_header
      _
    $region3: #{tpu_custom_call.1} parent=1 // loop_header
      %s12 = sphi 0, %s16
      %p13 = scmp.ge.s32.totalorder %s12, 4
      %s22 = sphi 0, %s24
      %s25 = sphi 0, %s22
      %s26 = sphi 0, %s25
      %s42 = sphi 0, %s26
      %s46 = sphi 0, %s46
      %s48 = sphi 0, %s46
      %s49 = sphi 0, %s48
      %s63 = sphi 0, %s49
      %s67 = sphi 0, %s67
      %s69 = sphi 0, %s67
      %s70 = sphi 0, %s69
      %s84 = sphi 0, %s70
      %s90 = sphi 0, %s92
      %s93 = sphi 0, %s90
      %s94 = sphi 0, %s93
      %s110 = sphi 0, %s94
    $region4: #{tpu_custom_call.1} parent=1 // loop_header_branch
      %15 = sbr.rel (%p13) target = $region8
    $region5: #{tpu_custom_call.1} parent=1 // loop_body
      %s17 = ssub.s32 %s12, 1
      %s18 = ssub.s32 %s12, 2
      %s19 = sadd.s32 %s12, 1
      %s20 = ssub.s32 %s12, %s19
      %p21 = scmp.eq.s32.totalorder %s20, 0
      %s23 = sadd.s32 %s22, 1
      %s24 = scalar_select %p21, %s22, %s23
      %p27 = pneg %p21
      %p28 = scmp.eq.s32.totalorder %s12, 1
      %p29 = por %p27, %p28
      %p30 = scmp.ne.s32.totalorder %s22, %s25
      %p31 = scmp.eq.s32.totalorder %s12, 0
      %p32 = por %p30, %p31
      %p33 = scmp.ne.s32.totalorder %s22, %s25
      %p34 = scmp.eq.s32.totalorder %s17, 1
      %p35 = por %p33, %p34
      %p36 = scmp.ne.s32.totalorder %s25, %s26
      %p37 = scmp.eq.s32.totalorder %s17, 0
      %p38 = por %p36, %p37
      %p39 = scmp.ne.s32.totalorder %s25, %s26
      %p40 = scmp.eq.s32.totalorder %s18, 1
      %p41 = por %p39, %p40
      %p43 = scmp.ne.s32.totalorder %s26, %s42
      %p44 = scmp.eq.s32.totalorder %s18, 0
      %p45 = por %p43, %p44
      %s47 = sadd.s32 %s46, 1
      %p50 = scmp.eq.s32.totalorder %s12, 1
      %p51 = scmp.ne.s32.totalorder %s46, %s48
      %p52 = scmp.eq.s32.totalorder %s12, 0
      %p53 = por %p51, %p52
      %p54 = scmp.ne.s32.totalorder %s46, %s48
      %p55 = scmp.eq.s32.totalorder %s17, 1
      %p56 = por %p54, %p55
      %p57 = scmp.ne.s32.totalorder %s48, %s49
      %p58 = scmp.eq.s32.totalorder %s17, 0
      %p59 = por %p57, %p58
      %p60 = scmp.ne.s32.totalorder %s48, %s49
      %p61 = scmp.eq.s32.totalorder %s18, 1
      %p62 = por %p60, %p61
      %p64 = scmp.ne.s32.totalorder %s49, %s63
      %p65 = scmp.eq.s32.totalorder %s18, 0
      %p66 = por %p64, %p65
      %s68 = sadd.s32 %s67, 1
      %p71 = scmp.eq.s32.totalorder %s12, 1
      %p72 = scmp.ne.s32.totalorder %s67, %s69
      %p73 = scmp.eq.s32.totalorder %s12, 0
      %p74 = por %p72, %p73
      %p75 = scmp.ne.s32.totalorder %s67, %s69
      %p76 = scmp.eq.s32.totalorder %s17, 1
      %p77 = por %p75, %p76
      %p78 = scmp.ne.s32.totalorder %s69, %s70
      %p79 = scmp.eq.s32.totalorder %s17, 0
      %p80 = por %p78, %p79
      %p81 = scmp.ne.s32.totalorder %s69, %s70
      %p82 = scmp.eq.s32.totalorder %s18, 1
      %p83 = por %p81, %p82
      %p85 = scmp.ne.s32.totalorder %s70, %s84
      %p86 = scmp.eq.s32.totalorder %s18, 0
      %p87 = por %p85, %p86
      %s88 = ssub.s32 %s12, %s19
      %p89 = scmp.eq.s32.totalorder %s88, 0
      %s91 = sadd.s32 %s90, 1
      %s92 = scalar_select %p89, %s90, %s91
      %p95 = pneg %p89
      %p96 = scmp.eq.s32.totalorder %s12, 1
      %p97 = por %p95, %p96
      %p98 = scmp.ne.s32.totalorder %s90, %s93
      %p99 = scmp.eq.s32.totalorder %s12, 0
      %p100 = por %p98, %p99
      %p101 = scmp.ne.s32.totalorder %s90, %s93
      %p102 = scmp.eq.s32.totalorder %s17, 1
      %p103 = por %p101, %p102
      %p104 = scmp.ne.s32.totalorder %s93, %s94
      %p105 = scmp.eq.s32.totalorder %s17, 0
      %p106 = por %p104, %p105
      %p107 = scmp.ne.s32.totalorder %s93, %s94
      %p108 = scmp.eq.s32.totalorder %s18, 1
      %p109 = por %p107, %p108
      %p111 = scmp.ne.s32.totalorder %s94, %s110
      %p112 = scmp.eq.s32.totalorder %s18, 0
      %p113 = por %p111, %p112
      %p114 = scmp.le.s32.totalorder 1, %s12
      %p115 = scmp.lt.s32.totalorder %s12, 3
      %p116 = pnand %p114, %p115
      %p117 = pneg %p116
      // Predicated region
      $region9: #{tpu_custom_call.1} parent=5 // pred_check
        _
      $region10: #{tpu_custom_call.1} parent=5 // pred_check_branch
        %119 = sbr.rel (%p116) target = $region12
      $region11: #{tpu_custom_call.1} parent=5 // pred_region
        %s120 = ssub.s32 %s12, 1
        // Predicated region
        $region13: #{tpu_custom_call.1} parent=11 // pred_check
          %p121 = pneg %p59
        $region14: #{tpu_custom_call.1} parent=11 // pred_check_branch
          %123 = sbr.rel (%p121) target = $region16
        $region15: #{tpu_custom_call.1} parent=11 // pred_region
          _
        $region16: #{tpu_custom_call.1} parent=11 // pred_fallthru
          _
        // Predicated region
        $region17: #{tpu_custom_call.1} parent=11 // pred_check
          %p124 = pneg %p80
        $region18: #{tpu_custom_call.1} parent=11 // pred_check_branch
          %126 = sbr.rel (%p124) target = $region20
        $region19: #{tpu_custom_call.1} parent=11 // pred_region
          _
        $region20: #{tpu_custom_call.1} parent=11 // pred_fallthru
          _
      $region12: #{tpu_custom_call.1} parent=5 // pred_fallthru
        _
      %p127 = scmp.lt.s32.totalorder %s12, 2
      // Predicated region
      $region21: #{tpu_custom_call.1} parent=5 // pred_check
        %p128 = pneg %p127
      $region22: #{tpu_custom_call.1} parent=5 // pred_check_branch
        %130 = sbr.rel (%p128) target = $region24
      $region23: #{tpu_custom_call.1} parent=5 // pred_region
        // Predicated region
        $region25: #{tpu_custom_call.1} parent=23 // pred_check
          %p131 = pneg %p32
        $region26: #{tpu_custom_call.1} parent=23 // pred_check_branch
          %133 = sbr.rel (%p131) target = $region28
        $region27: #{tpu_custom_call.1} parent=23 // pred_region
          %s134 = smul.u32 16, %s12
          %p135 = scmp.lt.s32.totalorder %s134, 31
          %s136 = scalar_select %p135, %s134, 31
          %s137 = smul.addr %s136, 8
          %s138 = scalar_lea.vmem %s0, %s137
          %s139 = smul.u32 16, %s12
        $region28: #{tpu_custom_call.1} parent=23 // pred_fallthru
          _
      $region24: #{tpu_custom_call.1} parent=5 // pred_fallthru
        _
      %p140 = scmp.le.s32.totalorder 1, %s12
      %p141 = scmp.lt.s32.totalorder %s12, 3
      %p142 = pnand %p140, %p141
      %p143 = pneg %p142
      // Predicated region
      $region29: #{tpu_custom_call.1} parent=5 // pred_check
        _
      $region30: #{tpu_custom_call.1} parent=5 // pred_check_branch
        %145 = sbr.rel (%p142) target = $region32
      $region31: #{tpu_custom_call.1} parent=5 // pred_region
        %s146 = ssub.s32 %s12, 1
        %s147 = smul.u32 16, %s17
        %p148 = scmp.lt.s32.totalorder %s147, 31
        %s149 = scalar_select %p148, %s147, 31
        %s150 = smul.addr %s149, 8
        %s151 = scalar_lea.vmem %s0, %s150
        %p152 = pneg %p38
        %p153 = pneg %p35
        %p154 = pneg %p59
        %p155 = pneg %p56
        %p156 = pneg %p80
        %p157 = pneg %p77
        %p158 = pneg %p106
        %p159 = pneg %p103
        %s160 = sand.u32 %s93, 1
        %s161 = scalar_lea.sflag [#allocation3], %s160
        %s162 = sand.u32 %s93, 1
        %s163 = smul.addr %s162, 128
        %s164 = scalar_lea.vmem [#allocation2], %s163
        %s165 = smul.u32 16, %s17
        %p166 = scmp.lt.s32.totalorder %s165, 31
        %s167 = scalar_select %p166, %s165, 31
        %s168 = smul.addr %s167, 8
        %s169 = scalar_lea.vmem %s0, %s168
        %s170 = smul.u32 16, %s17
        %s171 = smul.u32 16, %s17
        %v173 = vld [vmem:[%s169] sm:$0xff]
        %v174 = vld [vmem:[%s169 + $0x8] sm:$0xff]
        %v175 = vld [vmem:[%s169 + $0x10] sm:$0xff]
        %v176 = vld [vmem:[%s169 + $0x18] sm:$0xff]
        %v177 = vld [vmem:[%s169 + $0x20] sm:$0xff]
        %v178 = vld [vmem:[%s169 + $0x28] sm:$0xff]
        %v179 = vld [vmem:[%s169 + $0x30] sm:$0xff]
        %v180 = vld [vmem:[%s169 + $0x38] sm:$0xff]
        %v181 = vld [vmem:[%s169 + $0x40] sm:$0xff]
        %v182 = vld [vmem:[%s169 + $0x48] sm:$0xff]
        %v183 = vld [vmem:[%s169 + $0x50] sm:$0xff]
        %v184 = vld [vmem:[%s169 + $0x58] sm:$0xff]
        %v185 = vld [vmem:[%s169 + $0x60] sm:$0xff]
        %v186 = vld [vmem:[%s169 + $0x68] sm:$0xff]
        %v187 = vld [vmem:[%s169 + $0x70] sm:$0xff]
        %v188 = vld [vmem:[%s169 + $0x78] sm:$0xff]
        %v189 = vpack.c.bf16 %v174, %v173
        %v190 = vpack.c.bf16 %v176, %v175
        %v191 = vpack.c.bf16 %v178, %v177
        %v192 = vpack.c.bf16 %v180, %v179
        %v193 = vpack.c.bf16 %v182, %v181
        %v194 = vpack.c.bf16 %v184, %v183
        %v195 = vpack.c.bf16 %v186, %v185
        %v196 = vpack.c.bf16 %v188, %v187
        %v197 = vld [vmem:[%s1] sm:$0xf]
        %v198 = vld [vmem:[%s2] sm:$0x1]
        %v199 = vlaneseq
        %v200 = vshrl.u32 %v199, 7
        %v201 = vsub.s32 0, %v200
        %v202 = vrot.slane %v198, %v201
        %vm203 = vcmask 64512
        %v205 = vsel %vm203, %v189, 0
        %v208 = vsel %vm203, %v190, 0
        %v211 = vsel %vm203, %v191, 0
        %v214 = vsel %vm203, %v192, 0
        %v217 = vsel %vm203, %v193, 0
        %v220 = vsel %vm203, %v194, 0
        %v223 = vsel %vm203, %v195, 0
        %v226 = vsel %vm203, %v196, 0
        %vm228 = vcmask 1043456
        %v230 = vsel %vm228, %v197, 0
        %232 = vmatprep.subr.bf16.mxu0 0
        %233 = vmatpush1.bf16.msra.mxu0 %v230
        %234 = vmatprep.subr.bf16.mxu0 0
        %235 = vmatpush1.bf16.msra.mxu0 0
        %236 = vmatprep.subr.bf16.mxu0 0
        %237 = vmatpush1.bf16.msra.mxu0 0
        %238 = vmatprep.subr.bf16.mxu0 0
        %239 = vmatpush1.bf16.msra.mxu0 0
        %240 = vmatprep.subr.bf16.mxu0 0
        %241 = vmatpush1.bf16.msra.mxu0 0
        %242 = vmatprep.subr.bf16.mxu0 0
        %243 = vmatpush1.bf16.msra.mxu0 0
        %244 = vmatprep.subr.bf16.mxu0 0
        %245 = vmatpush1.bf16.msra.mxu0 0
        %246 = vmatprep.subr.bf16.mxu0 0
        %247 = vmatpush1.bf16.msra.mxu0 0
        %248 = vmatprep.subr.bf16.mxu0 0
        %249 = vmatpush1.bf16.msra.mxu0 0
        %250 = vmatprep.subr.bf16.mxu0 0
        %251 = vmatpush1.bf16.msra.mxu0 0
        %252 = vmatprep.subr.bf16.mxu0 0
        %253 = vmatpush1.bf16.msra.mxu0 0
        %254 = vmatprep.subr.bf16.mxu0 0
        %255 = vmatpush1.bf16.msra.mxu0 0
        %256 = vmatprep.subr.bf16.mxu0 0
        %257 = vmatpush1.bf16.msra.mxu0 0
        %258 = vmatprep.subr.bf16.mxu0 0
        %259 = vmatpush1.bf16.msra.mxu0 0
        %260 = vmatprep.subr.bf16.mxu0 0
        %261 = vmatpush1.bf16.msra.mxu0 0
        %262 = vmatprep.subr.bf16.mxu0 0
        %263 = vmatpush1.bf16.msra.mxu0 0
        %264 = vmatprep.mubr.bf16.mxu0 0
        %265 = vmatmul.mubr.bf16.gmra.mrb[0].mxu0 %v205
        %v266 = vpop.f32.mrb[0].mxu0
        %v267 = vadd.f32 %v202, %v266
        %v268 = vpop.f32.mrb[0].mxu0
        %v269 = vpop.f32.mrb[0].mxu0
        %v270 = vadd.f32 %v202, %v269
        %v271 = vpop.f32.mrb[0].mxu0
        %272 = vmatprep.mubr.bf16.mxu0 0
        %273 = vmatmul.mubr.bf16.gmra.mrb[0].mxu0 %v208
        %v274 = vpop.f32.mrb[0].mxu0
        %v275 = vadd.f32 %v202, %v274
        %v276 = vpop.f32.mrb[0].mxu0
        %v277 = vpop.f32.mrb[0].mxu0
        %v278 = vadd.f32 %v202, %v277
        %v279 = vpop.f32.mrb[0].mxu0
        %280 = vmatprep.mubr.bf16.mxu0 0
        %281 = vmatmul.mubr.bf16.gmra.mrb[0].mxu0 %v211
        %v282 = vpop.f32.mrb[0].mxu0
        %v283 = vadd.f32 %v202, %v282
        %v284 = vpop.f32.mrb[0].mxu0
        %v285 = vpop.f32.mrb[0].mxu0
        %v286 = vadd.f32 %v202, %v285
        %v287 = vpop.f32.mrb[0].mxu0
        %288 = vmatprep.mubr.bf16.mxu0 0
        %289 = vmatmul.mubr.bf16.gmra.mrb[0].mxu0 %v214
        %v290 = vpop.f32.mrb[0].mxu0
        %v291 = vadd.f32 %v202, %v290
        %v292 = vpop.f32.mrb[0].mxu0
        %v293 = vpop.f32.mrb[0].mxu0
        %v294 = vadd.f32 %v202, %v293
        %v295 = vpop.f32.mrb[0].mxu0
        %296 = vmatprep.mubr.bf16.mxu0 0
        %297 = vmatmul.mubr.bf16.gmra.mrb[0].mxu0 %v217
        %v298 = vpop.f32.mrb[0].mxu0
        %v299 = vadd.f32 %v202, %v298
        %v300 = vpop.f32.mrb[0].mxu0
        %v301 = vpop.f32.mrb[0].mxu0
        %v302 = vadd.f32 %v202, %v301
        %v303 = vpop.f32.mrb[0].mxu0
        %304 = vmatprep.mubr.bf16.mxu0 0
        %305 = vmatmul.mubr.bf16.gmra.mrb[0].mxu0 %v220
        %v306 = vpop.f32.mrb[0].mxu0
        %v307 = vadd.f32 %v202, %v306
        %v308 = vpop.f32.mrb[0].mxu0
        %v309 = vpop.f32.mrb[0].mxu0
        %v310 = vadd.f32 %v202, %v309
        %v311 = vpop.f32.mrb[0].mxu0
        %312 = vmatprep.mubr.bf16.mxu0 0
        %313 = vmatmul.mubr.bf16.gmra.mrb[0].mxu0 %v223
        %v314 = vpop.f32.mrb[0].mxu0
        %v315 = vadd.f32 %v202, %v314
        %v316 = vpop.f32.mrb[0].mxu0
        %v317 = vpop.f32.mrb[0].mxu0
        %v318 = vadd.f32 %v202, %v317
        %v319 = vpop.f32.mrb[0].mxu0
        %320 = vmatprep.mubr.bf16.mxu0 0
        %321 = vmatmul.mubr.bf16.gmra.mrb[0].mxu0 %v226
        %v322 = vpop.f32.mrb[0].mxu0
        %v323 = vadd.f32 %v202, %v322
        %v324 = vpop.f32.mrb[0].mxu0
        %v325 = vpop.f32.mrb[0].mxu0
        %v326 = vadd.f32 %v202, %v325
        %v327 = vpop.f32.mrb[0].mxu0
        %328 = vdwg.mxu0
        %v329 = vmax.f32 %v267, 0.0
        %v330 = vmax.f32 %v270, 0.0
        %v331 = vmax.f32 %v275, 0.0
        %v332 = vmax.f32 %v278, 0.0
        %v333 = vmax.f32 %v283, 0.0
        %v334 = vmax.f32 %v286, 0.0
        %v335 = vmax.f32 %v291, 0.0
        %v336 = vmax.f32 %v294, 0.0
        %v337 = vmax.f32 %v299, 0.0
        %v338 = vmax.f32 %v302, 0.0
        %v339 = vmax.f32 %v307, 0.0
        %v340 = vmax.f32 %v310, 0.0
        %v341 = vmax.f32 %v315, 0.0
        %v342 = vmax.f32 %v318, 0.0
        %v343 = vmax.f32 %v323, 0.0
        %v344 = vmax.f32 %v326, 0.0
        %v345 = vpack.c.bf16 %v330, %v329
        %v346 = vpack.c.bf16 %v332, %v331
        %v347 = vpack.c.bf16 %v334, %v333
        %v348 = vpack.c.bf16 %v336, %v335
        %v349 = vpack.c.bf16 %v338, %v337
        %v350 = vpack.c.bf16 %v340, %v339
        %v351 = vpack.c.bf16 %v342, %v341
        %v352 = vpack.c.bf16 %v344, %v343
        %v353 = vld [vmem:[%s1 + $0x4] sm:$0xf]
        %v354 = vld [vmem:[%s1 + $0x8] sm:$0xf]
        %v355 = vld [vmem:[%s1 + $0xc] sm:$0xf]
        %v356 = vld [vmem:[%s1 + $0x10] sm:$0xf]
        %v357 = vld [vmem:[%s1 + $0x14] sm:$0xf]
        %v358 = vld [vmem:[%s1 + $0x18] sm:$0xf]
        %v359 = vld [vmem:[%s1 + $0x1c] sm:$0xf]
        %v360 = vld [vmem:[%s1 + $0x20] sm:$0xf]
        %v361 = vld [vmem:[%s1 + $0x24] sm:$0xf]
        %v362 = vld [vmem:[%s1 + $0x28] sm:$0xf]
        %v363 = vld [vmem:[%s1 + $0x2c] sm:$0xf]
        %v364 = vld [vmem:[%s1 + $0x30] sm:$0xf]
        %v365 = vld [vmem:[%s1 + $0x34] sm:$0xf]
        %v366 = vld [vmem:[%s1 + $0x38] sm:$0xf]
        %v367 = vld [vmem:[%s1 + $0x3c] sm:$0xf]
        %v368 = vld [vmem:[%s1 + $0x40] sm:$0xf]
        %v369 = vld [vmem:[%s2 + $0x1] sm:$0x1]
        %v370 = vlaneseq
        %v371 = vshrl.u32 %v370, 7
        %v372 = vsub.s32 0, %v371
        %v373 = vrot.slane %v369, %v372
        %v390 = vunpack.c.l.b16 %v353
        %v391 = vunpack.c.l.b16 %v354
        %v392 = vunpack.c.l.b16 %v355
        %v393 = vunpack.c.l.b16 %v356
        %v394 = vunpack.c.l.b16 %v357
        %v395 = vunpack.c.l.b16 %v358
        %v396 = vunpack.c.l.b16 %v359
        %v397 = vunpack.c.l.b16 %v360
        %v398 = vunpack.c.l.b16 %v361
        %v399 = vunpack.c.l.b16 %v362
        %v400 = vunpack.c.l.b16 %v363
        %v401 = vunpack.c.l.b16 %v364
        %v402 = vunpack.c.l.b16 %v365
        %v403 = vunpack.c.l.b16 %v366
        %v404 = vunpack.c.l.b16 %v367
        %v405 = vunpack.c.l.b16 %v368
        %v406 = vpack.c.b16 %v391, %v390
        %v407 = vpack.c.b16 %v393, %v392
        %v408 = vpack.c.b16 %v395, %v394
        %v409 = vpack.c.b16 %v397, %v396
        %v410 = vpack.c.b16 %v399, %v398
        %v411 = vpack.c.b16 %v401, %v400
        %v412 = vpack.c.b16 %v403, %v402
        %v413 = vpack.c.b16 %v405, %v404
        %422 = vmatprep.subr.bf16.mxu0 0
        %423 = vmatpush1.bf16.msra.mxu0 %v406
        %424 = vmatprep.subr.bf16.mxu0 0
        %425 = vmatpush1.bf16.msra.mxu0 %v407
        %426 = vmatprep.subr.bf16.mxu0 0
        %427 = vmatpush1.bf16.msra.mxu0 %v408
        %428 = vmatprep.subr.bf16.mxu0 0
        %429 = vmatpush1.bf16.msra.mxu0 %v409
        %430 = vmatprep.subr.bf16.mxu0 0
        %431 = vmatpush1.bf16.msra.mxu0 %v410
        %432 = vmatprep.subr.bf16.mxu0 0
        %433 = vmatpush1.bf16.msra.mxu0 %v411
        %434 = vmatprep.subr.bf16.mxu0 0
        %435 = vmatpush1.bf16.msra.mxu0 %v412
        %436 = vmatprep.subr.bf16.mxu0 0
        %437 = vmatpush1.bf16.msra.mxu0 %v413
        %438 = vmatprep.subr.bf16.mxu0 0
        %439 = vmatpush1.bf16.msra.mxu0 0
        %440 = vmatprep.subr.bf16.mxu0 0
        %441 = vmatpush1.bf16.msra.mxu0 0
        %442 = vmatprep.subr.bf16.mxu0 0
        %443 = vmatpush1.bf16.msra.mxu0 0
        %444 = vmatprep.subr.bf16.mxu0 0
        %445 = vmatpush1.bf16.msra.mxu0 0
        %446 = vmatprep.subr.bf16.mxu0 0
        %447 = vmatpush1.bf16.msra.mxu0 0
        %448 = vmatprep.subr.bf16.mxu0 0
        %449 = vmatpush1.bf16.msra.mxu0 0
        %450 = vmatprep.subr.bf16.mxu0 0
        %451 = vmatpush1.bf16.msra.mxu0 0
        %452 = vmatprep.subr.bf16.mxu0 0
        %453 = vmatpush1.bf16.msra.mxu0 0
        %454 = vmatprep.mubr.bf16.mxu0 0
        %455 = vmatmul.mubr.bf16.gmra.mrb[0].mxu0 %v345
        %v456 = vpop.f32.mrb[0].mxu0
        %v457 = vadd.f32 %v373, %v456
        %v458 = vpop.f32.mrb[0].mxu0
        %v459 = vpop.f32.mrb[0].mxu0
        %v460 = vadd.f32 %v373, %v459
        %v461 = vpop.f32.mrb[0].mxu0
        %462 = vmatprep.mubr.bf16.mxu0 0
        %463 = vmatmul.mubr.bf16.gmra.mrb[0].mxu0 %v346
        %v464 = vpop.f32.mrb[0].mxu0
        %v465 = vadd.f32 %v373, %v464
        %v466 = vpop.f32.mrb[0].mxu0
        %v467 = vpop.f32.mrb[0].mxu0
        %v468 = vadd.f32 %v373, %v467
        %v469 = vpop.f32.mrb[0].mxu0
        %470 = vmatprep.mubr.bf16.mxu0 0
        %471 = vmatmul.mubr.bf16.gmra.mrb[0].mxu0 %v347
        %v472 = vpop.f32.mrb[0].mxu0
        %v473 = vadd.f32 %v373, %v472
        %v474 = vpop.f32.mrb[0].mxu0
        %v475 = vpop.f32.mrb[0].mxu0
        %v476 = vadd.f32 %v373, %v475
        %v477 = vpop.f32.mrb[0].mxu0
        %478 = vmatprep.mubr.bf16.mxu0 0
        %479 = vmatmul.mubr.bf16.gmra.mrb[0].mxu0 %v348
        %v480 = vpop.f32.mrb[0].mxu0
        %v481 = vadd.f32 %v373, %v480
        %v482 = vpop.f32.mrb[0].mxu0
        %v483 = vpop.f32.mrb[0].mxu0
        %v484 = vadd.f32 %v373, %v483
        %v485 = vpop.f32.mrb[0].mxu0
        %486 = vmatprep.mubr.bf16.mxu0 0
        %487 = vmatmul.mubr.bf16.gmra.mrb[0].mxu0 %v349
        %v488 = vpop.f32.mrb[0].mxu0
        %v489 = vadd.f32 %v373, %v488
        %v490 = vpop.f32.mrb[0].mxu0
        %v491 = vpop.f32.mrb[0].mxu0
        %v492 = vadd.f32 %v373, %v491
        %v493 = vpop.f32.mrb[0].mxu0
        %494 = vmatprep.mubr.bf16.mxu0 0
        %495 = vmatmul.mubr.bf16.gmra.mrb[0].mxu0 %v350
        %v496 = vpop.f32.mrb[0].mxu0
        %v497 = vadd.f32 %v373, %v496
        %v498 = vpop.f32.mrb[0].mxu0
        %v499 = vpop.f32.mrb[0].mxu0
        %v500 = vadd.f32 %v373, %v499
        %v501 = vpop.f32.mrb[0].mxu0
        %502 = vmatprep.mubr.bf16.mxu0 0
        %503 = vmatmul.mubr.bf16.gmra.mrb[0].mxu0 %v351
        %v504 = vpop.f32.mrb[0].mxu0
        %v505 = vadd.f32 %v373, %v504
        %v506 = vpop.f32.mrb[0].mxu0
        %v507 = vpop.f32.mrb[0].mxu0
        %v508 = vadd.f32 %v373, %v507
        %v509 = vpop.f32.mrb[0].mxu0
        %510 = vmatprep.mubr.bf16.mxu0 0
        %511 = vmatmul.mubr.bf16.gmra.mrb[0].mxu0 %v352
        %v512 = vpop.f32.mrb[0].mxu0
        %v513 = vadd.f32 %v373, %v512
        %v514 = vpop.f32.mrb[0].mxu0
        %v515 = vpop.f32.mrb[0].mxu0
        %v516 = vadd.f32 %v373, %v515
        %v517 = vpop.f32.mrb[0].mxu0
        %518 = vdwg.mxu0
        %v519 = vmax.f32 %v457, 0.0
        %v520 = vmax.f32 %v460, 0.0
        %v521 = vmax.f32 %v465, 0.0
        %v522 = vmax.f32 %v468, 0.0
        %v523 = vmax.f32 %v473, 0.0
        %v524 = vmax.f32 %v476, 0.0
        %v525 = vmax.f32 %v481, 0.0
        %v526 = vmax.f32 %v484, 0.0
        %v527 = vmax.f32 %v489, 0.0
        %v528 = vmax.f32 %v492, 0.0
        %v529 = vmax.f32 %v497, 0.0
        %v530 = vmax.f32 %v500, 0.0
        %v531 = vmax.f32 %v505, 0.0
        %v532 = vmax.f32 %v508, 0.0
        %v533 = vmax.f32 %v513, 0.0
        %v534 = vmax.f32 %v516, 0.0
        %v535 = vpack.c.bf16 %v520, %v519
        %v536 = vpack.c.bf16 %v522, %v521
        %v537 = vpack.c.bf16 %v524, %v523
        %v538 = vpack.c.bf16 %v526, %v525
        %v539 = vpack.c.bf16 %v528, %v527
        %v540 = vpack.c.bf16 %v530, %v529
        %v541 = vpack.c.bf16 %v532, %v531
        %v542 = vpack.c.bf16 %v534, %v533
        %v543 = vld [vmem:[%s1 + $0x44] sm:$0xf]
        %v544 = vld [vmem:[%s1 + $0x48] sm:$0xf]
        %v545 = vld [vmem:[%s1 + $0x4c] sm:$0xf]
        %v546 = vld [vmem:[%s1 + $0x50] sm:$0xf]
        %v547 = vld [vmem:[%s1 + $0x54] sm:$0xf]
        %v548 = vld [vmem:[%s1 + $0x58] sm:$0xf]
        %v549 = vld [vmem:[%s1 + $0x5c] sm:$0xf]
        %v550 = vld [vmem:[%s1 + $0x60] sm:$0xf]
        %v551 = vld [vmem:[%s1 + $0x64] sm:$0xf]
        %v552 = vld [vmem:[%s1 + $0x68] sm:$0xf]
        %v553 = vld [vmem:[%s1 + $0x6c] sm:$0xf]
        %v554 = vld [vmem:[%s1 + $0x70] sm:$0xf]
        %v555 = vld [vmem:[%s1 + $0x74] sm:$0xf]
        %v556 = vld [vmem:[%s1 + $0x78] sm:$0xf]
        %v557 = vld [vmem:[%s1 + $0x7c] sm:$0xf]
        %v558 = vld [vmem:[%s1 + $0x80] sm:$0xf]
        %v559 = vld [vmem:[%s2 + $0x2] sm:$0x1]
        %v560 = vlaneseq
        %v561 = vshrl.u32 %v560, 7
        %v562 = vsub.s32 0, %v561
        %v563 = vrot.slane %v559, %v562
        %v580 = vunpack.c.l.b16 %v543
        %v581 = vunpack.c.l.b16 %v544
        %v582 = vunpack.c.l.b16 %v545
        %v583 = vunpack.c.l.b16 %v546
        %v584 = vunpack.c.l.b16 %v547
        %v585 = vunpack.c.l.b16 %v548
        %v586 = vunpack.c.l.b16 %v549
        %v587 = vunpack.c.l.b16 %v550
        %v588 = vunpack.c.l.b16 %v551
        %v589 = vunpack.c.l.b16 %v552
        %v590 = vunpack.c.l.b16 %v553
        %v591 = vunpack.c.l.b16 %v554
        %v592 = vunpack.c.l.b16 %v555
        %v593 = vunpack.c.l.b16 %v556
        %v594 = vunpack.c.l.b16 %v557
        %v595 = vunpack.c.l.b16 %v558
        %v596 = vpack.c.b16 %v581, %v580
        %v597 = vpack.c.b16 %v583, %v582
        %v598 = vpack.c.b16 %v585, %v584
        %v599 = vpack.c.b16 %v587, %v586
        %v600 = vpack.c.b16 %v589, %v588
        %v601 = vpack.c.b16 %v591, %v590
        %v602 = vpack.c.b16 %v593, %v592
        %v603 = vpack.c.b16 %v595, %v594
        %612 = vmatprep.subr.bf16.mxu0 0
        %613 = vmatpush1.bf16.msra.mxu0 %v596
        %614 = vmatprep.subr.bf16.mxu0 0
        %615 = vmatpush1.bf16.msra.mxu0 %v597
        %616 = vmatprep.subr.bf16.mxu0 0
        %617 = vmatpush1.bf16.msra.mxu0 %v598
        %618 = vmatprep.subr.bf16.mxu0 0
        %619 = vmatpush1.bf16.msra.mxu0 %v599
        %620 = vmatprep.subr.bf16.mxu0 0
        %621 = vmatpush1.bf16.msra.mxu0 %v600
        %622 = vmatprep.subr.bf16.mxu0 0
        %623 = vmatpush1.bf16.msra.mxu0 %v601
        %624 = vmatprep.subr.bf16.mxu0 0
        %625 = vmatpush1.bf16.msra.mxu0 %v602
        %626 = vmatprep.subr.bf16.mxu0 0
        %627 = vmatpush1.bf16.msra.mxu0 %v603
        %628 = vmatprep.subr.bf16.mxu0 0
        %629 = vmatpush1.bf16.msra.mxu0 0
        %630 = vmatprep.subr.bf16.mxu0 0
        %631 = vmatpush1.bf16.msra.mxu0 0
        %632 = vmatprep.subr.bf16.mxu0 0
        %633 = vmatpush1.bf16.msra.mxu0 0
        %634 = vmatprep.subr.bf16.mxu0 0
        %635 = vmatpush1.bf16.msra.mxu0 0
        %636 = vmatprep.subr.bf16.mxu0 0
        %637 = vmatpush1.bf16.msra.mxu0 0
        %638 = vmatprep.subr.bf16.mxu0 0
        %639 = vmatpush1.bf16.msra.mxu0 0
        %640 = vmatprep.subr.bf16.mxu0 0
        %641 = vmatpush1.bf16.msra.mxu0 0
        %642 = vmatprep.subr.bf16.mxu0 0
        %643 = vmatpush1.bf16.msra.mxu0 0
        %644 = vmatprep.mubr.bf16.mxu0 0
        %645 = vmatmul.mubr.bf16.gmra.mrb[0].mxu0 %v535
        %v646 = vpop.f32.mrb[0].mxu0
        %v647 = vadd.f32 %v563, %v646
        %v648 = vpop.f32.mrb[0].mxu0
        %v649 = vpop.f32.mrb[0].mxu0
        %v650 = vadd.f32 %v563, %v649
        %v651 = vpop.f32.mrb[0].mxu0
        %652 = vmatprep.mubr.bf16.mxu0 0
        %653 = vmatmul.mubr.bf16.gmra.mrb[0].mxu0 %v536
        %v654 = vpop.f32.mrb[0].mxu0
        %v655 = vadd.f32 %v563, %v654
        %v656 = vpop.f32.mrb[0].mxu0
        %v657 = vpop.f32.mrb[0].mxu0
        %v658 = vadd.f32 %v563, %v657
        %v659 = vpop.f32.mrb[0].mxu0
        %660 = vmatprep.mubr.bf16.mxu0 0
        %661 = vmatmul.mubr.bf16.gmra.mrb[0].mxu0 %v537
        %v662 = vpop.f32.mrb[0].mxu0
        %v663 = vadd.f32 %v563, %v662
        %v664 = vpop.f32.mrb[0].mxu0
        %v665 = vpop.f32.mrb[0].mxu0
        %v666 = vadd.f32 %v563, %v665
        %v667 = vpop.f32.mrb[0].mxu0
        %668 = vmatprep.mubr.bf16.mxu0 0
        %669 = vmatmul.mubr.bf16.gmra.mrb[0].mxu0 %v538
        %v670 = vpop.f32.mrb[0].mxu0
        %v671 = vadd.f32 %v563, %v670
        %v672 = vpop.f32.mrb[0].mxu0
        %v673 = vpop.f32.mrb[0].mxu0
        %v674 = vadd.f32 %v563, %v673
        %v675 = vpop.f32.mrb[0].mxu0
        %676 = vmatprep.mubr.bf16.mxu0 0
        %677 = vmatmul.mubr.bf16.gmra.mrb[0].mxu0 %v539
        %v678 = vpop.f32.mrb[0].mxu0
        %v679 = vadd.f32 %v563, %v678
        %v680 = vpop.f32.mrb[0].mxu0
        %v681 = vpop.f32.mrb[0].mxu0
        %v682 = vadd.f32 %v563, %v681
        %v683 = vpop.f32.mrb[0].mxu0
        %684 = vmatprep.mubr.bf16.mxu0 0
        %685 = vmatmul.mubr.bf16.gmra.mrb[0].mxu0 %v540
        %v686 = vpop.f32.mrb[0].mxu0
        %v687 = vadd.f32 %v563, %v686
        %v688 = vpop.f32.mrb[0].mxu0
        %v689 = vpop.f32.mrb[0].mxu0
        %v690 = vadd.f32 %v563, %v689
        %v691 = vpop.f32.mrb[0].mxu0
        %692 = vmatprep.mubr.bf16.mxu0 0
        %693 = vmatmul.mubr.bf16.gmra.mrb[0].mxu0 %v541
        %v694 = vpop.f32.mrb[0].mxu0
        %v695 = vadd.f32 %v563, %v694
        %v696 = vpop.f32.mrb[0].mxu0
        %v697 = vpop.f32.mrb[0].mxu0
        %v698 = vadd.f32 %v563, %v697
        %v699 = vpop.f32.mrb[0].mxu0
        %700 = vmatprep.mubr.bf16.mxu0 0
        %701 = vmatmul.mubr.bf16.gmra.mrb[0].mxu0 %v542
        %v702 = vpop.f32.mrb[0].mxu0
        %v703 = vadd.f32 %v563, %v702
        %v704 = vpop.f32.mrb[0].mxu0
        %v705 = vpop.f32.mrb[0].mxu0
        %v706 = vadd.f32 %v563, %v705
        %v707 = vpop.f32.mrb[0].mxu0
        %708 = vdwg.mxu0
        %v709 = vmax.f32 %v647, 0.0
        %v710 = vmax.f32 %v650, 0.0
        %v711 = vmax.f32 %v655, 0.0
        %v712 = vmax.f32 %v658, 0.0
        %v713 = vmax.f32 %v663, 0.0
        %v714 = vmax.f32 %v666, 0.0
        %v715 = vmax.f32 %v671, 0.0
        %v716 = vmax.f32 %v674, 0.0
        %v717 = vmax.f32 %v679, 0.0
        %v718 = vmax.f32 %v682, 0.0
        %v719 = vmax.f32 %v687, 0.0
        %v720 = vmax.f32 %v690, 0.0
        %v721 = vmax.f32 %v695, 0.0
        %v722 = vmax.f32 %v698, 0.0
        %v723 = vmax.f32 %v703, 0.0
        %v724 = vmax.f32 %v706, 0.0
        %v725 = vpack.c.bf16 %v710, %v709
        %v726 = vpack.c.bf16 %v712, %v711
        %v727 = vpack.c.bf16 %v714, %v713
        %v728 = vpack.c.bf16 %v716, %v715
        %v729 = vpack.c.bf16 %v718, %v717
        %v730 = vpack.c.bf16 %v720, %v719
        %v731 = vpack.c.bf16 %v722, %v721
        %v732 = vpack.c.bf16 %v724, %v723
        %v733 = vld [vmem:[%s1 + $0x84] sm:$0xf]
        %v734 = vld [vmem:[%s1 + $0x88] sm:$0xf]
        %v735 = vld [vmem:[%s1 + $0x8c] sm:$0xf]
        %v736 = vld [vmem:[%s1 + $0x90] sm:$0xf]
        %v737 = vld [vmem:[%s1 + $0x94] sm:$0xf]
        %v738 = vld [vmem:[%s1 + $0x98] sm:$0xf]
        %v739 = vld [vmem:[%s1 + $0x9c] sm:$0xf]
        %v740 = vld [vmem:[%s1 + $0xa0] sm:$0xf]
        %v741 = vld [vmem:[%s1 + $0xa4] sm:$0xf]
        %v742 = vld [vmem:[%s1 + $0xa8] sm:$0xf]
        %v743 = vld [vmem:[%s1 + $0xac] sm:$0xf]
        %v744 = vld [vmem:[%s1 + $0xb0] sm:$0xf]
        %v745 = vld [vmem:[%s1 + $0xb4] sm:$0xf]
        %v746 = vld [vmem:[%s1 + $0xb8] sm:$0xf]
        %v747 = vld [vmem:[%s1 + $0xbc] sm:$0xf]
        %v748 = vld [vmem:[%s1 + $0xc0] sm:$0xf]
        %v749 = vld [vmem:[%s2 + $0x3] sm:$0x1]
        %v750 = vlaneseq
        %v751 = vshrl.u32 %v750, 7
        %v752 = vsub.s32 0, %v751
        %v753 = vrot.slane %v749, %v752
        %v770 = vunpack.c.l.b16 %v733
        %v771 = vunpack.c.l.b16 %v734
        %v772 = vunpack.c.l.b16 %v735
        %v773 = vunpack.c.l.b16 %v736
        %v774 = vunpack.c.l.b16 %v737
        %v775 = vunpack.c.l.b16 %v738
        %v776 = vunpack.c.l.b16 %v739
        %v777 = vunpack.c.l.b16 %v740
        %v778 = vunpack.c.l.b16 %v741
        %v779 = vunpack.c.l.b16 %v742
        %v780 = vunpack.c.l.b16 %v743
        %v781 = vunpack.c.l.b16 %v744
        %v782 = vunpack.c.l.b16 %v745
        %v783 = vunpack.c.l.b16 %v746
        %v784 = vunpack.c.l.b16 %v747
        %v785 = vunpack.c.l.b16 %v748
        %v786 = vpack.c.b16 %v771, %v770
        %v787 = vpack.c.b16 %v773, %v772
        %v788 = vpack.c.b16 %v775, %v774
        %v789 = vpack.c.b16 %v777, %v776
        %v790 = vpack.c.b16 %v779, %v778
        %v791 = vpack.c.b16 %v781, %v780
        %v792 = vpack.c.b16 %v783, %v782
        %v793 = vpack.c.b16 %v785, %v784
        %802 = vmatprep.subr.bf16.mxu0 0
        %803 = vmatpush1.bf16.msra.mxu0 %v786
        %804 = vmatprep.subr.bf16.mxu0 0
        %805 = vmatpush1.bf16.msra.mxu0 %v787
        %806 = vmatprep.subr.bf16.mxu0 0
        %807 = vmatpush1.bf16.msra.mxu0 %v788
        %808 = vmatprep.subr.bf16.mxu0 0
        %809 = vmatpush1.bf16.msra.mxu0 %v789
        %810 = vmatprep.subr.bf16.mxu0 0
        %811 = vmatpush1.bf16.msra.mxu0 %v790
        %812 = vmatprep.subr.bf16.mxu0 0
        %813 = vmatpush1.bf16.msra.mxu0 %v791
        %814 = vmatprep.subr.bf16.mxu0 0
        %815 = vmatpush1.bf16.msra.mxu0 %v792
        %816 = vmatprep.subr.bf16.mxu0 0
        %817 = vmatpush1.bf16.msra.mxu0 %v793
        %818 = vmatprep.subr.bf16.mxu0 0
        %819 = vmatpush1.bf16.msra.mxu0 0
        %820 = vmatprep.subr.bf16.mxu0 0
        %821 = vmatpush1.bf16.msra.mxu0 0
        %822 = vmatprep.subr.bf16.mxu0 0
        %823 = vmatpush1.bf16.msra.mxu0 0
        %824 = vmatprep.subr.bf16.mxu0 0
        %825 = vmatpush1.bf16.msra.mxu0 0
        %826 = vmatprep.subr.bf16.mxu0 0
        %827 = vmatpush1.bf16.msra.mxu0 0
        %828 = vmatprep.subr.bf16.mxu0 0
        %829 = vmatpush1.bf16.msra.mxu0 0
        %830 = vmatprep.subr.bf16.mxu0 0
        %831 = vmatpush1.bf16.msra.mxu0 0
        %832 = vmatprep.subr.bf16.mxu0 0
        %833 = vmatpush1.bf16.msra.mxu0 0
        %834 = vmatprep.mubr.bf16.mxu0 0
        %835 = vmatmul.mubr.bf16.gmra.mrb[0].mxu0 %v725
        %v836 = vpop.f32.mrb[0].mxu0
        %v837 = vadd.f32 %v753, %v836
        %v838 = vpop.f32.mrb[0].mxu0
        %v839 = vpop.f32.mrb[0].mxu0
        %v840 = vadd.f32 %v753, %v839
        %v841 = vpop.f32.mrb[0].mxu0
        %842 = vmatprep.mubr.bf16.mxu0 0
        %843 = vmatmul.mubr.bf16.gmra.mrb[0].mxu0 %v726
        %v844 = vpop.f32.mrb[0].mxu0
        %v845 = vadd.f32 %v753, %v844
        %v846 = vpop.f32.mrb[0].mxu0
        %v847 = vpop.f32.mrb[0].mxu0
        %v848 = vadd.f32 %v753, %v847
        %v849 = vpop.f32.mrb[0].mxu0
        %850 = vmatprep.mubr.bf16.mxu0 0
        %851 = vmatmul.mubr.bf16.gmra.mrb[0].mxu0 %v727
        %v852 = vpop.f32.mrb[0].mxu0
        %v853 = vadd.f32 %v753, %v852
        %v854 = vpop.f32.mrb[0].mxu0
        %v855 = vpop.f32.mrb[0].mxu0
        %v856 = vadd.f32 %v753, %v855
        %v857 = vpop.f32.mrb[0].mxu0
        %858 = vmatprep.mubr.bf16.mxu0 0
        %859 = vmatmul.mubr.bf16.gmra.mrb[0].mxu0 %v728
        %v860 = vpop.f32.mrb[0].mxu0
        %v861 = vadd.f32 %v753, %v860
        %v862 = vpop.f32.mrb[0].mxu0
        %v863 = vpop.f32.mrb[0].mxu0
        %v864 = vadd.f32 %v753, %v863
        %v865 = vpop.f32.mrb[0].mxu0
        %866 = vmatprep.mubr.bf16.mxu0 0
        %867 = vmatmul.mubr.bf16.gmra.mrb[0].mxu0 %v729
        %v868 = vpop.f32.mrb[0].mxu0
        %v869 = vadd.f32 %v753, %v868
        %v870 = vpop.f32.mrb[0].mxu0
        %v871 = vpop.f32.mrb[0].mxu0
        %v872 = vadd.f32 %v753, %v871
        %v873 = vpop.f32.mrb[0].mxu0
        %874 = vmatprep.mubr.bf16.mxu0 0
        %875 = vmatmul.mubr.bf16.gmra.mrb[0].mxu0 %v730
        %v876 = vpop.f32.mrb[0].mxu0
        %v877 = vadd.f32 %v753, %v876
        %v878 = vpop.f32.mrb[0].mxu0
        %v879 = vpop.f32.mrb[0].mxu0
        %v880 = vadd.f32 %v753, %v879
        %v881 = vpop.f32.mrb[0].mxu0
        %882 = vmatprep.mubr.bf16.mxu0 0
        %883 = vmatmul.mubr.bf16.gmra.mrb[0].mxu0 %v731
        %v884 = vpop.f32.mrb[0].mxu0
        %v885 = vadd.f32 %v753, %v884
        %v886 = vpop.f32.mrb[0].mxu0
        %v887 = vpop.f32.mrb[0].mxu0
        %v888 = vadd.f32 %v753, %v887
        %v889 = vpop.f32.mrb[0].mxu0
        %890 = vmatprep.mubr.bf16.mxu0 0
        %891 = vmatmul.mubr.bf16.gmra.mrb[0].mxu0 %v732
        %v892 = vpop.f32.mrb[0].mxu0
        %v893 = vadd.f32 %v753, %v892
        %v894 = vpop.f32.mrb[0].mxu0
        %v895 = vpop.f32.mrb[0].mxu0
        %v896 = vadd.f32 %v753, %v895
        %v897 = vpop.f32.mrb[0].mxu0
        %898 = vdwg.mxu0
        %v899 = vmax.f32 %v837, 0.0
        %v900 = vmax.f32 %v840, 0.0
        %v901 = vmax.f32 %v845, 0.0
        %v902 = vmax.f32 %v848, 0.0
        %v903 = vmax.f32 %v853, 0.0
        %v904 = vmax.f32 %v856, 0.0
        %v905 = vmax.f32 %v861, 0.0
        %v906 = vmax.f32 %v864, 0.0
        %v907 = vmax.f32 %v869, 0.0
        %v908 = vmax.f32 %v872, 0.0
        %v909 = vmax.f32 %v877, 0.0
        %v910 = vmax.f32 %v880, 0.0
        %v911 = vmax.f32 %v885, 0.0
        %v912 = vmax.f32 %v888, 0.0
        %v913 = vmax.f32 %v893, 0.0
        %v914 = vmax.f32 %v896, 0.0
        %v915 = vpack.c.bf16 %v900, %v899
        %v916 = vpack.c.bf16 %v902, %v901
        %v917 = vpack.c.bf16 %v904, %v903
        %v918 = vpack.c.bf16 %v906, %v905
        %v919 = vpack.c.bf16 %v908, %v907
        %v920 = vpack.c.bf16 %v910, %v909
        %v921 = vpack.c.bf16 %v912, %v911
        %v922 = vpack.c.bf16 %v914, %v913
        %v923 = vld [vmem:[%s1 + $0xc4] sm:$0xf]
        %v924 = vld [vmem:[%s1 + $0xc8] sm:$0xf]
        %v925 = vld [vmem:[%s1 + $0xcc] sm:$0xf]
        %v926 = vld [vmem:[%s1 + $0xd0] sm:$0xf]
        %v927 = vld [vmem:[%s1 + $0xd4] sm:$0xf]
        %v928 = vld [vmem:[%s1 + $0xd8] sm:$0xf]
        %v929 = vld [vmem:[%s1 + $0xdc] sm:$0xf]
        %v930 = vld [vmem:[%s1 + $0xe0] sm:$0xf]
        %v931 = vld [vmem:[%s1 + $0xe4] sm:$0xf]
        %v932 = vld [vmem:[%s1 + $0xe8] sm:$0xf]
        %v933 = vld [vmem:[%s1 + $0xec] sm:$0xf]
        %v934 = vld [vmem:[%s1 + $0xf0] sm:$0xf]
        %v935 = vld [vmem:[%s1 + $0xf4] sm:$0xf]
        %v936 = vld [vmem:[%s1 + $0xf8] sm:$0xf]
        %v937 = vld [vmem:[%s1 + $0xfc] sm:$0xf]
        %v938 = vld [vmem:[%s1 + $0x100] sm:$0xf]
        %v939 = vld [vmem:[%s2 + $0x4] sm:$0x1]
        %v940 = vlaneseq
        %v941 = vshrl.u32 %v940, 7
        %v942 = vsub.s32 0, %v941
        %v943 = vrot.slane %v939, %v942
        %v960 = vunpack.c.l.b16 %v923
        %v961 = vunpack.c.l.b16 %v924
        %v962 = vunpack.c.l.b16 %v925
        %v963 = vunpack.c.l.b16 %v926
        %v964 = vunpack.c.l.b16 %v927
        %v965 = vunpack.c.l.b16 %v928
        %v966 = vunpack.c.l.b16 %v929
        %v967 = vunpack.c.l.b16 %v930
        %v968 = vunpack.c.l.b16 %v931
        %v969 = vunpack.c.l.b16 %v932
        %v970 = vunpack.c.l.b16 %v933
        %v971 = vunpack.c.l.b16 %v934
        %v972 = vunpack.c.l.b16 %v935
        %v973 = vunpack.c.l.b16 %v936
        %v974 = vunpack.c.l.b16 %v937
        %v975 = vunpack.c.l.b16 %v938
        %v976 = vpack.c.b16 %v961, %v960
        %v977 = vpack.c.b16 %v963, %v962
        %v978 = vpack.c.b16 %v965, %v964
        %v979 = vpack.c.b16 %v967, %v966
        %v980 = vpack.c.b16 %v969, %v968
        %v981 = vpack.c.b16 %v971, %v970
        %v982 = vpack.c.b16 %v973, %v972
        %v983 = vpack.c.b16 %v975, %v974
        %992 = vmatprep.subr.bf16.mxu0 0
        %993 = vmatpush1.bf16.msra.mxu0 %v976
        %994 = vmatprep.subr.bf16.mxu0 0
        %995 = vmatpush1.bf16.msra.mxu0 %v977
        %996 = vmatprep.subr.bf16.mxu0 0
        %997 = vmatpush1.bf16.msra.mxu0 %v978
        %998 = vmatprep.subr.bf16.mxu0 0
        %999 = vmatpush1.bf16.msra.mxu0 %v979
        %1000 = vmatprep.subr.bf16.mxu0 0
        %1001 = vmatpush1.bf16.msra.mxu0 %v980
        %1002 = vmatprep.subr.bf16.mxu0 0
        %1003 = vmatpush1.bf16.msra.mxu0 %v981
        %1004 = vmatprep.subr.bf16.mxu0 0
        %1005 = vmatpush1.bf16.msra.mxu0 %v982
        %1006 = vmatprep.subr.bf16.mxu0 0
        %1007 = vmatpush1.bf16.msra.mxu0 %v983
        %1008 = vmatprep.subr.bf16.mxu0 0
        %1009 = vmatpush1.bf16.msra.mxu0 0
        %1010 = vmatprep.subr.bf16.mxu0 0
        %1011 = vmatpush1.bf16.msra.mxu0 0
        %1012 = vmatprep.subr.bf16.mxu0 0
        %1013 = vmatpush1.bf16.msra.mxu0 0
        %1014 = vmatprep.subr.bf16.mxu0 0
        %1015 = vmatpush1.bf16.msra.mxu0 0
        %1016 = vmatprep.subr.bf16.mxu0 0
        %1017 = vmatpush1.bf16.msra.mxu0 0
        %1018 = vmatprep.subr.bf16.mxu0 0
        %1019 = vmatpush1.bf16.msra.mxu0 0
        %1020 = vmatprep.subr.bf16.mxu0 0
        %1021 = vmatpush1.bf16.msra.mxu0 0
        %1022 = vmatprep.subr.bf16.mxu0 0
        %1023 = vmatpush1.bf16.msra.mxu0 0
        %1024 = vmatprep.mubr.bf16.mxu0 0
        %1025 = vmatmul.mubr.bf16.gmra.mrb[0].mxu0 %v915
        %v1026 = vpop.f32.mrb[0].mxu0
        %v1027 = vadd.f32 %v943, %v1026
        %v1028 = vpop.f32.mrb[0].mxu0
        %v1029 = vpop.f32.mrb[0].mxu0
        %v1030 = vadd.f32 %v943, %v1029
        %v1031 = vpop.f32.mrb[0].mxu0
        %1032 = vmatprep.mubr.bf16.mxu0 0
        %1033 = vmatmul.mubr.bf16.gmra.mrb[0].mxu0 %v916
        %v1034 = vpop.f32.mrb[0].mxu0
        %v1035 = vadd.f32 %v943, %v1034
        %v1036 = vpop.f32.mrb[0].mxu0
        %v1037 = vpop.f32.mrb[0].mxu0
        %v1038 = vadd.f32 %v943, %v1037
        %v1039 = vpop.f32.mrb[0].mxu0
        %1040 = vmatprep.mubr.bf16.mxu0 0
        %1041 = vmatmul.mubr.bf16.gmra.mrb[0].mxu0 %v917
        %v1042 = vpop.f32.mrb[0].mxu0
        %v1043 = vadd.f32 %v943, %v1042
        %v1044 = vpop.f32.mrb[0].mxu0
        %v1045 = vpop.f32.mrb[0].mxu0
        %v1046 = vadd.f32 %v943, %v1045
        %v1047 = vpop.f32.mrb[0].mxu0
        %1048 = vmatprep.mubr.bf16.mxu0 0
        %1049 = vmatmul.mubr.bf16.gmra.mrb[0].mxu0 %v918
        %v1050 = vpop.f32.mrb[0].mxu0
        %v1051 = vadd.f32 %v943, %v1050
        %v1052 = vpop.f32.mrb[0].mxu0
        %v1053 = vpop.f32.mrb[0].mxu0
        %v1054 = vadd.f32 %v943, %v1053
        %v1055 = vpop.f32.mrb[0].mxu0
        %1056 = vmatprep.mubr.bf16.mxu0 0
        %1057 = vmatmul.mubr.bf16.gmra.mrb[0].mxu0 %v919
        %v1058 = vpop.f32.mrb[0].mxu0
        %v1059 = vadd.f32 %v943, %v1058
        %v1060 = vpop.f32.mrb[0].mxu0
        %v1061 = vpop.f32.mrb[0].mxu0
        %v1062 = vadd.f32 %v943, %v1061
        %v1063 = vpop.f32.mrb[0].mxu0
        %1064 = vmatprep.mubr.bf16.mxu0 0
        %1065 = vmatmul.mubr.bf16.gmra.mrb[0].mxu0 %v920
        %v1066 = vpop.f32.mrb[0].mxu0
        %v1067 = vadd.f32 %v943, %v1066
        %v1068 = vpop.f32.mrb[0].mxu0
        %v1069 = vpop.f32.mrb[0].mxu0
        %v1070 = vadd.f32 %v943, %v1069
        %v1071 = vpop.f32.mrb[0].mxu0
        %1072 = vmatprep.mubr.bf16.mxu0 0
        %1073 = vmatmul.mubr.bf16.gmra.mrb[0].mxu0 %v921
        %v1074 = vpop.f32.mrb[0].mxu0
        %v1075 = vadd.f32 %v943, %v1074
        %v1076 = vpop.f32.mrb[0].mxu0
        %v1077 = vpop.f32.mrb[0].mxu0
        %v1078 = vadd.f32 %v943, %v1077
        %v1079 = vpop.f32.mrb[0].mxu0
        %1080 = vmatprep.mubr.bf16.mxu0 0
        %1081 = vmatmul.mubr.bf16.gmra.mrb[0].mxu0 %v922
        %v1082 = vpop.f32.mrb[0].mxu0
        %v1083 = vadd.f32 %v943, %v1082
        %v1084 = vpop.f32.mrb[0].mxu0
        %v1085 = vpop.f32.mrb[0].mxu0
        %v1086 = vadd.f32 %v943, %v1085
        %v1087 = vpop.f32.mrb[0].mxu0
        %1088 = vdwg.mxu0
        %1089 = vst [vmem:[%s164] sm:$0xff] %v1027
        %1090 = vst [vmem:[%s164 + $0x8] sm:$0xff] %v1030
        %1091 = vst [vmem:[%s164 + $0x10] sm:$0xff] %v1035
        %1092 = vst [vmem:[%s164 + $0x18] sm:$0xff] %v1038
        %1093 = vst [vmem:[%s164 + $0x20] sm:$0xff] %v1043
        %1094 = vst [vmem:[%s164 + $0x28] sm:$0xff] %v1046
        %1095 = vst [vmem:[%s164 + $0x30] sm:$0xff] %v1051
        %1096 = vst [vmem:[%s164 + $0x38] sm:$0xff] %v1054
        %1097 = vst [vmem:[%s164 + $0x40] sm:$0xff] %v1059
        %1098 = vst [vmem:[%s164 + $0x48] sm:$0xff] %v1062
        %1099 = vst [vmem:[%s164 + $0x50] sm:$0xff] %v1067
        %1100 = vst [vmem:[%s164 + $0x58] sm:$0xff] %v1070
        %1101 = vst [vmem:[%s164 + $0x60] sm:$0xff] %v1075
        %1102 = vst [vmem:[%s164 + $0x68] sm:$0xff] %v1078
        %1103 = vst [vmem:[%s164 + $0x70] sm:$0xff] %v1083
        %1104 = vst [vmem:[%s164 + $0x78] sm:$0xff] %v1086
        %s1105 = sand.u32 %s93, 1
        %s1106 = scalar_lea.sflag [#allocation3], %s1105
        %s1107 = sand.u32 %s93, 1
        %s1108 = smul.addr %s1107, 128
        %s1109 = scalar_lea.vmem [#allocation2], %s1108
        // Predicated region
        $region33: #{tpu_custom_call.1} parent=31 // pred_check
          %p1110 = pneg %p103
        $region34: #{tpu_custom_call.1} parent=31 // pred_check_branch
          %1112 = sbr.rel (%p1110) target = $region36
        $region35: #{tpu_custom_call.1} parent=31 // pred_region
          %s1113 = smul.u32 16, %s17
          %s1115 = ssub.s32 2048, 2048
          %1116 = vsyncadd %s1106, %s1115
          %s1117 = smul.addr %s1113, 128
          %s1118 = scalar_lea.hbm %s3, %s1117
          %s1119 = sshll.u32 %s1109, 4
          %s1120 = int_to_ptr.vmem [resolvable:$true] %s1119
          %1125 = dma.vmem_to_hbm [thread:$0]  %s1120, 2048, %s1118, %s1106, 128, 128, 8
        $region36: #{tpu_custom_call.1} parent=31 // pred_fallthru
          _
      $region32: #{tpu_custom_call.1} parent=5 // pred_fallthru
        _
      %p1126 = scmp.le.s32.totalorder 2, %s12
      // Predicated region
      $region37: #{tpu_custom_call.1} parent=5 // pred_check
        %p1127 = pneg %p1126
      $region38: #{tpu_custom_call.1} parent=5 // pred_check_branch
        %1129 = sbr.rel (%p1127) target = $region40
      $region39: #{tpu_custom_call.1} parent=5 // pred_region
        %s1130 = ssub.s32 %s12, 2
        // Predicated region
        $region41: #{tpu_custom_call.1} parent=39 // pred_check
          %p1131 = pneg %p109
        $region42: #{tpu_custom_call.1} parent=39 // pred_check_branch
          %1133 = sbr.rel (%p1131) target = $region44
        $region43: #{tpu_custom_call.1} parent=39 // pred_region
          %s1134 = sand.u32 %s94, 1
          %s1135 = scalar_lea.sflag [#allocation3], %s1134
          %s1136 = sand.u32 %s94, 1
          %s1137 = smul.addr %s1136, 128
          %s1138 = scalar_lea.vmem [#allocation2], %s1137
          %1139 = dma.done %s1135, 2048
        $region44: #{tpu_custom_call.1} parent=39 // pred_fallthru
          _
      $region40: #{tpu_custom_call.1} parent=5 // pred_fallthru
        _
    $region6: #{tpu_custom_call.1} parent=1 // loop_footer
      %s16 = sadd.s32 1, %s12
    $region7: #{tpu_custom_call.1} parent=1 // loop_footer_branch
      %11 = sbr.rel target = $region3
    $region8: #{tpu_custom_call.1} parent=1 // loop_exit
      _
    %1140 = vsyncpa [#allocation3], 1
    %s1141 = scalar_lea.sflag [#allocation3], 1
    %1142 = vsyncpa %s1141, 1

</llo_original>
